<compile_context>
chip_gen: v5e
topology: v5e:2x2
jax: 0.10.0
libtpu: 0.0.40
codegen_flags: <defaults>
</compile_context>

<pallas_src>
import functools

import jax
import jax.numpy as jnp
from jax import lax
from jax.experimental import pallas as pl
from jax.experimental.pallas import tpu as pltpu

K = 7          # kernel_size
P = 3          # padding ("same" conv)
TH_CONV = 32   # conv row-strip height (keeps the f32 accumulator small)
MIB = 1024 * 1024


# ----------------------------------------------------------------------------
# VMEM budget (generation aware, conservative fallback)
# ----------------------------------------------------------------------------
def _vmem_budget_bytes():
    cap = 64 * MIB
    try:
        info = pltpu.get_tpu_info()
        c = getattr(info, "vmem_capacity_bytes", None)
        if c:
            cap = int(c)
    except Exception:
        pass
    # leave double-buffering / compiler headroom:
    #   128 MiB parts (v5e/v6e) -> ~96 MiB ; 64 MiB parts (v7x) -> ~48 MiB
    return max(32 * MIB, cap - max(16 * MIB, cap // 4))


# ----------------------------------------------------------------------------
# In-kernel helpers
# ----------------------------------------------------------------------------
def _pool_channels(x_ref, csub, H, W):
    """f32 channel-sum and channel-max of an x block (1, csub, H, W).

    Loops over channels so no (csub, H, W) value is ever materialized."""
    s0 = jnp.zeros((H, W), jnp.float32)
    m0 = jnp.full((H, W), -jnp.inf, jnp.float32)
    if csub <= 64:                              # static unroll for small C
        s, m = s0, m0
        for c in range(csub):
            xc = x_ref[0, c].astype(jnp.float32)
            s = s + xc
            m = jnp.maximum(m, xc)
        return s, m

    def body(c, carry):
        s, m = carry
        xc = x_ref[0, c].astype(jnp.float32)
        return s + xc, jnp.maximum(m, xc)

    return lax.fori_loop(0, csub, body, (s0, m0))


def _write_padded(pad_ref, plane, H, W):
    """Write `plane` into the interior of pad_ref; zero only the P-wide border."""
    zrow = jnp.zeros((P, W + 2 * P), jnp.float32)
    zcol = jnp.zeros((H, P), jnp.float32)
    pad_ref[pl.ds(0, P), :] = zrow
    pad_ref[pl.ds(P + H, P), :] = zrow
    pad_ref[pl.ds(P, H), pl.ds(0, P)] = zcol
    pad_ref[pl.ds(P, H), pl.ds(P + W, P)] = zcol
    pad_ref[pl.ds(P, H), pl.ds(P, W)] = plane


def _conv7x7_sigmoid(w_ref, pad_a, pad_m, att_ref, H, W):
    """att_ref[:, :] = sigmoid(conv7x7([avg, max])), accumulated in f32.

    Row-strip blocked: per strip the 7 lane-shifted (kw) windows of each padded
    plane are materialized once; the 49 taps use sublane-only (kh) offsets."""
    wa = [w_ref[kh * K + kw] for kh in range(K) for kw in range(K)]
    wm = [w_ref[K * K + kh * K + kw] for kh in range(K) for kw in range(K)]

    def strip(r0, th):
        sa = [pad_a[pl.ds(r0, th + 2 * P), pl.ds(kw, W)] for kw in range(K)]
        sm = [pad_m[pl.ds(r0, th + 2 * P), pl.ds(kw, W)] for kw in range(K)]
        acc = jnp.zeros((th, W), jnp.float32)
        for kh in range(K):
            for kw in range(K):
                i = kh * K + kw
                acc = (acc
                       + wa[i] * sa[kw][kh:kh + th, :]
                       + wm[i] * sm[kw][kh:kh + th, :])
        att_ref[pl.ds(r0, th), :] = jax.nn.sigmoid(acc)

    n_full = H // TH_CONV
    if n_full > 0:
        def body(i, carry):
            strip(pl.multiple_of(i * TH_CONV, 8), TH_CONV)
            return carry
        lax.fori_loop(0, n_full, body, 0)
    rem = H - n_full * TH_CONV
    if rem > 0:
        strip(n_full * TH_CONV, rem)


# ----------------------------------------------------------------------------
# Kernels
# ----------------------------------------------------------------------------
def fused_kernel(w_ref, x_ref, o_ref, pad_a, pad_m, att_scr):
    """Fully fused per-batch: pool -> conv7x7 -> sigmoid -> multiply.

    x block (1, C, H, W) is read once from HBM; only `out` is written back."""
    _, C, H, W = x_ref.shape
    s, m = _pool_channels(x_ref, C, H, W)
    _write_padded(pad_a, s * (1.0 / C), H, W)
    _write_padded(pad_m, m, H, W)
    _conv7x7_sigmoid(w_ref, pad_a, pad_m, att_scr, H, W)
    att = att_scr[...].astype(o_ref.dtype)       # (H, W), cast down once

    if C <= 64:                                   # static unroll for small C
        for c in range(C):
            o_ref[0, c] = x_ref[0, c] * att
    else:
        def body(c, carry):
            o_ref[0, c] = x_ref[0, c] * att
            return carry
        lax.fori_loop(0, C, body, 0)


def pool_conv_kernel(w_ref, x_ref, att_ref, sum_scr, max_scr, pad_a, pad_m,
                     att_scr, *, inv_c):
    """Streaming pool+conv (channel-tiled).  Pooling is accumulated in VMEM
    scratch across the channel-tile grid axis; the conv + sigmoid run once at
    the last step and the attention map is emitted in x.dtype."""
    _, tcc, H, W = x_ref.shape
    t = pl.program_id(1)
    s, m = _pool_channels(x_ref, tcc, H, W)

    @pl.when(t == 0)
    def _():
        sum_scr[...] = s
        max_scr[...] = m

    @pl.when(t > 0)
    def _():
        sum_scr[...] = sum_scr[...] + s
        max_scr[...] = jnp.maximum(max_scr[...], m)

    @pl.when(t == pl.num_programs(1) - 1)
    def _():
        _write_padded(pad_a, sum_scr[...] * inv_c, H, W)
        _write_padded(pad_m, max_scr[...], H, W)
        _conv7x7_sigmoid(w_ref, pad_a, pad_m, att_scr, H, W)
        att_ref[0] = att_scr[...].astype(att_ref.dtype)


def mul_kernel(a_ref, x_ref, o_ref):
    """out = att * x (channel-tiled, native dtype)."""
    o_ref[0] = x_ref[0] * a_ref[...]              # (TCc,H,W) * (1,H,W)


# ----------------------------------------------------------------------------
# Wrapper
# ----------------------------------------------------------------------------
def _pick_channel_tile(C, H, W, itemsize, target_bytes):
    per_c = max(1, H * W * itemsize)
    max_c = max(1, target_bytes // per_c)
    if max_c >= C:
        return C
    best = 1
    for d in range(2, C + 1):
        if C % d == 0 and d <= max_c:
            best = d
    return best


def slam_forward(x, weight, *, force_streaming=False):
    """x: (N, C, H, W); weight: (1, 2, K, K) conv weight (PyTorch OIHW)."""
    N, C, H, W = x.shape
    itemsize = jnp.dtype(x.dtype).itemsize
    w_flat = weight.reshape(-1).astype(jnp.float32)       # (2*K*K,) -> SMEM

    budget = _vmem_budget_bytes()
    pad_shape = (H + 2 * P, W + 2 * P)
    conv_scratch = 2 * pad_shape[0] * pad_shape[1] * 4 + H * W * 4

    # ---- fully fused per-batch path: read x once, write out once ----------
    fused_live = 4 * C * H * W * itemsize + conv_scratch + 4 * MIB
    if not force_streaming and fused_live <= budget:
        return pl.pallas_call(
            fused_kernel,
            out_shape=jax.ShapeDtypeStruct((N, C, H, W), x.dtype),
            grid=(N,),
            in_specs=[
                pl.BlockSpec(memory_space=pltpu.MemorySpace.SMEM),     # weights
                pl.BlockSpec((1, C, H, W), lambda n: (n, 0, 0, 0)),    # x
            ],
            out_specs=pl.BlockSpec((1, C, H, W), lambda n: (n, 0, 0, 0)),
            scratch_shapes=[
                pltpu.VMEM(pad_shape, jnp.float32),    # padded avg plane
                pltpu.VMEM(pad_shape, jnp.float32),    # padded max plane
                pltpu.VMEM((H, W), jnp.float32),       # f32 attention map
            ],
            compiler_params=pltpu.CompilerParams(
                dimension_semantics=("parallel",),
                vmem_limit_bytes=budget),
        )(w_flat, x)

    # ---- streaming fallback (channel-tiled): pooled planes never hit HBM ---
    target_blk = 8 * MIB if budget > 64 * MIB else 4 * MIB
    TCc = _pick_channel_tile(C, H, W, itemsize, target_blk)
    n_ct = C // TCc

    att = pl.pallas_call(
        functools.partial(pool_conv_kernel, inv_c=1.0 / C),
        out_shape=jax.ShapeDtypeStruct((N, H, W), x.dtype),   # att in x.dtype
        grid=(N, n_ct),
        in_specs=[
            pl.BlockSpec(memory_space=pltpu.MemorySpace.SMEM),          # weights
            pl.BlockSpec((1, TCc, H, W), lambda n, t: (n, t, 0, 0)),    # x chunk
        ],
        out_specs=pl.BlockSpec((1, H, W), lambda n, t: (n, 0, 0)),
        scratch_shapes=[
            pltpu.VMEM((H, W), jnp.float32),       # running channel sum
            pltpu.VMEM((H, W), jnp.float32),       # running channel max
            pltpu.VMEM(pad_shape, jnp.float32),    # padded avg plane
            pltpu.VMEM(pad_shape, jnp.float32),    # padded max plane
            pltpu.VMEM((H, W), jnp.float32),       # f32 attention map
        ],
        compiler_params=pltpu.CompilerParams(
            dimension_semantics=("parallel", "arbitrary"),
            vmem_limit_bytes=budget),
    )(w_flat, x)

    out = pl.pallas_call(
        mul_kernel,
        out_shape=jax.ShapeDtypeStruct((N, C, H, W), x.dtype),
        grid=(N, n_ct),
        in_specs=[
            pl.BlockSpec((1, H, W), lambda n, t: (n, 0, 0)),            # att
            pl.BlockSpec((1, TCc, H, W), lambda n, t: (n, t, 0, 0)),    # x
        ],
        out_specs=pl.BlockSpec((1, TCc, H, W), lambda n, t: (n, t, 0, 0)),
        compiler_params=pltpu.CompilerParams(
            dimension_semantics=("parallel", "parallel"),
            vmem_limit_bytes=budget),
    )(att, x)
    return out


# ----------------------------------------------------------------------------
# Pure-JAX reference (mirrors the PyTorch forward) + self-test
# ----------------------------------------------------------------------------
def slam_reference(x, weight):
    avg = jnp.mean(x, axis=1, keepdims=True)
    mx = jnp.max(x, axis=1, keepdims=True)
    pooled = jnp.concatenate([avg, mx], axis=1)
    conv = lax.conv_general_dilated(
        pooled, weight, window_strides=(1, 1),
        padding=((P, P), (P, P)),
        dimension_numbers=("NCHW", "OIHW", "NCHW"))
    return jax.nn.sigmoid(conv) * x


if __name__ == "__main__":
    key = jax.random.PRNGKey(0)
    kx, kw = jax.random.split(key)

    N, C, H, W = 2, 4, 16, 16
    x = jax.random.normal(kx, (N, C, H, W), dtype=jnp.float32)

    # Deterministic Conv2d(2, 1, 7, bias=False) weight (kaiming-uniform-like bound).
    fan_in = 2 * K * K
    bound = 1.0 / (fan_in ** 0.5)
    weight = jax.random.uniform(kw, (1, 2, K, K), jnp.float32, -bound, bound)

    ref = slam_reference(x, weight)

    # Fused per-batch path (selected automatically for this size).
    out_fused = jax.block_until_ready(slam_forward(x, weight))
    assert out_fused.shape == x.shape and out_fused.dtype == x.dtype
    assert jnp.allclose(out_fused, ref, atol=1e-5, rtol=1e-5), "fused mismatch"

    # Streaming (channel-tiled) fallback path, exercised explicitly.
    out_stream = jax.block_until_ready(slam_forward(x, weight, force_streaming=True))
    assert out_stream.shape == x.shape and out_stream.dtype == x.dtype
    assert jnp.allclose(out_stream, ref, atol=1e-5, rtol=1e-5), "streaming mismatch"

    print("KERNEL_OK")
</pallas_src>

<mosaic_0001>
module attributes {stable_mosaic.version = 11 : i64} {
  func.func @fused_kernel(%arg0: i32, %arg1: memref<98xf32, #tpu.memory_space<smem>>, %arg2: memref<1x4x16x16xf32, #tpu.memory_space<vmem>>, %arg3: memref<1x4x16x16xf32, #tpu.memory_space<vmem>>, %arg4: memref<22x22xf32, #tpu.memory_space<vmem>>, %arg5: memref<22x22xf32, #tpu.memory_space<vmem>>, %arg6: memref<16x16xf32, #tpu.memory_space<vmem>>) attributes {dimension_semantics = [#tpu.dimension_semantics<parallel>], iteration_bounds = array<i64: 2>, scalar_prefetch = 0 : i64, scratch_operands = 3 : i64, tpu.core_type = #tpu.core_type<tc>, window_params = [{transform_indices = @transform_0, window_bounds = array<i64: 98>}, {transform_indices = @transform_1, window_bounds = array<i64: 1, 4, 16, 16>}, {transform_indices = @transform_2, window_bounds = array<i64: 1, 4, 16, 16>}]} {
    %cst = arith.constant 0.000000e+00 : f32
    %0 = vector.broadcast %cst : f32 to vector<16x16xf32>
    %cst_0 = arith.constant 0xFF800000 : f32
    %1 = vector.broadcast %cst_0 : f32 to vector<16x16xf32>
    %c0 = arith.constant 0 : index
    %c0_1 = arith.constant 0 : index
    %c0_2 = arith.constant 0 : index
    %c0_3 = arith.constant 0 : index
    %2 = vector.load %arg2[%c0, %c0_1, %c0_2, %c0_3] : memref<1x4x16x16xf32, #tpu.memory_space<vmem>>, vector<1x1x16x16xf32>
    %3 = vector.shape_cast %2 : vector<1x1x16x16xf32> to vector<16x16xf32>
    %4 = arith.addf %0, %3 : vector<16x16xf32>
    %5 = arith.maximumf %1, %3 : vector<16x16xf32>
    %c0_4 = arith.constant 0 : index
    %c1 = arith.constant 1 : index
    %c0_5 = arith.constant 0 : index
    %c0_6 = arith.constant 0 : index
    %6 = vector.load %arg2[%c0_4, %c1, %c0_5, %c0_6] : memref<1x4x16x16xf32, #tpu.memory_space<vmem>>, vector<1x1x16x16xf32>
    %7 = vector.shape_cast %6 : vector<1x1x16x16xf32> to vector<16x16xf32>
    %8 = arith.addf %4, %7 : vector<16x16xf32>
    %9 = arith.maximumf %5, %7 : vector<16x16xf32>
    %c0_7 = arith.constant 0 : index
    %c2 = arith.constant 2 : index
    %c0_8 = arith.constant 0 : index
    %c0_9 = arith.constant 0 : index
    %10 = vector.load %arg2[%c0_7, %c2, %c0_8, %c0_9] : memref<1x4x16x16xf32, #tpu.memory_space<vmem>>, vector<1x1x16x16xf32>
    %11 = vector.shape_cast %10 : vector<1x1x16x16xf32> to vector<16x16xf32>
    %12 = arith.addf %8, %11 : vector<16x16xf32>
    %13 = arith.maximumf %9, %11 : vector<16x16xf32>
    %c0_10 = arith.constant 0 : index
    %c3 = arith.constant 3 : index
    %c0_11 = arith.constant 0 : index
    %c0_12 = arith.constant 0 : index
    %14 = vector.load %arg2[%c0_10, %c3, %c0_11, %c0_12] : memref<1x4x16x16xf32, #tpu.memory_space<vmem>>, vector<1x1x16x16xf32>
    %15 = vector.shape_cast %14 : vector<1x1x16x16xf32> to vector<16x16xf32>
    %16 = arith.addf %12, %15 : vector<16x16xf32>
    %17 = arith.maximumf %13, %15 : vector<16x16xf32>
    %cst_13 = arith.constant 2.500000e-01 : f32
    %18 = vector.broadcast %cst_13 : f32 to vector<16x16xf32>
    %19 = arith.mulf %16, %18 : vector<16x16xf32>
    %cst_14 = arith.constant 0.000000e+00 : f32
    %20 = vector.broadcast %cst_14 : f32 to vector<3x22xf32>
    %cst_15 = arith.constant 0.000000e+00 : f32
    %21 = vector.broadcast %cst_15 : f32 to vector<16x3xf32>
    %c0_16 = arith.constant 0 : index
    %c0_17 = arith.constant 0 : index
    %22 = vector.load %arg4[%c0_16, %c0_17] : memref<22x22xf32, #tpu.memory_space<vmem>>, vector<3x22xf32>
    tpu.vector_store %arg4[%c0_16, %c0_17], %20 {strides = array<i32>} : memref<22x22xf32, #tpu.memory_space<vmem>>, vector<3x22xf32>,
    %c19 = arith.constant 19 : index
    %c0_18 = arith.constant 0 : index
    %23 = vector.load %arg4[%c19, %c0_18] : memref<22x22xf32, #tpu.memory_space<vmem>>, vector<3x22xf32>
    tpu.vector_store %arg4[%c19, %c0_18], %20 {strides = array<i32>} : memref<22x22xf32, #tpu.memory_space<vmem>>, vector<3x22xf32>,
    %c3_19 = arith.constant 3 : index
    %c0_20 = arith.constant 0 : index
    %24 = vector.load %arg4[%c3_19, %c0_20] : memref<22x22xf32, #tpu.memory_space<vmem>>, vector<16x3xf32>
    tpu.vector_store %arg4[%c3_19, %c0_20], %21 {strides = array<i32>} : memref<22x22xf32, #tpu.memory_space<vmem>>, vector<16x3xf32>,
    %c3_21 = arith.constant 3 : index
    %c19_22 = arith.constant 19 : index
    %25 = vector.load %arg4[%c3_21, %c19_22] : memref<22x22xf32, #tpu.memory_space<vmem>>, vector<16x3xf32>
    tpu.vector_store %arg4[%c3_21, %c19_22], %21 {strides = array<i32>} : memref<22x22xf32, #tpu.memory_space<vmem>>, vector<16x3xf32>,
    %c3_23 = arith.constant 3 : index
    %c3_24 = arith.constant 3 : index
    %26 = vector.load %arg4[%c3_23, %c3_24] : memref<22x22xf32, #tpu.memory_space<vmem>>, vector<16x16xf32>
    tpu.vector_store %arg4[%c3_23, %c3_24], %19 {strides = array<i32>} : memref<22x22xf32, #tpu.memory_space<vmem>>, vector<16x16xf32>,
    %cst_25 = arith.constant 0.000000e+00 : f32
    %27 = vector.broadcast %cst_25 : f32 to vector<3x22xf32>
    %cst_26 = arith.constant 0.000000e+00 : f32
    %28 = vector.broadcast %cst_26 : f32 to vector<16x3xf32>
    %c0_27 = arith.constant 0 : index
    %c0_28 = arith.constant 0 : index
    %29 = vector.load %arg5[%c0_27, %c0_28] : memref<22x22xf32, #tpu.memory_space<vmem>>, vector<3x22xf32>
    tpu.vector_store %arg5[%c0_27, %c0_28], %27 {strides = array<i32>} : memref<22x22xf32, #tpu.memory_space<vmem>>, vector<3x22xf32>,
    %c19_29 = arith.constant 19 : index
    %c0_30 = arith.constant 0 : index
    %30 = vector.load %arg5[%c19_29, %c0_30] : memref<22x22xf32, #tpu.memory_space<vmem>>, vector<3x22xf32>
    tpu.vector_store %arg5[%c19_29, %c0_30], %27 {strides = array<i32>} : memref<22x22xf32, #tpu.memory_space<vmem>>, vector<3x22xf32>,
    %c3_31 = arith.constant 3 : index
    %c0_32 = arith.constant 0 : index
    %31 = vector.load %arg5[%c3_31, %c0_32] : memref<22x22xf32, #tpu.memory_space<vmem>>, vector<16x3xf32>
    tpu.vector_store %arg5[%c3_31, %c0_32], %28 {strides = array<i32>} : memref<22x22xf32, #tpu.memory_space<vmem>>, vector<16x3xf32>,
    %c3_33 = arith.constant 3 : index
    %c19_34 = arith.constant 19 : index
    %32 = vector.load %arg5[%c3_33, %c19_34] : memref<22x22xf32, #tpu.memory_space<vmem>>, vector<16x3xf32>
    tpu.vector_store %arg5[%c3_33, %c19_34], %28 {strides = array<i32>} : memref<22x22xf32, #tpu.memory_space<vmem>>, vector<16x3xf32>,
    %c3_35 = arith.constant 3 : index
    %c3_36 = arith.constant 3 : index
    %33 = vector.load %arg5[%c3_35, %c3_36] : memref<22x22xf32, #tpu.memory_space<vmem>>, vector<16x16xf32>
    tpu.vector_store %arg5[%c3_35, %c3_36], %17 {strides = array<i32>} : memref<22x22xf32, #tpu.memory_space<vmem>>, vector<16x16xf32>,
    %c0_37 = arith.constant 0 : index
    %34 = memref.load %arg1[%c0_37] : memref<98xf32, #tpu.memory_space<smem>>
    %c1_38 = arith.constant 1 : index
    %35 = memref.load %arg1[%c1_38] : memref<98xf32, #tpu.memory_space<smem>>
    %c2_39 = arith.constant 2 : index
    %36 = memref.load %arg1[%c2_39] : memref<98xf32, #tpu.memory_space<smem>>
    %c3_40 = arith.constant 3 : index
    %37 = memref.load %arg1[%c3_40] : memref<98xf32, #tpu.memory_space<smem>>
    %c4 = arith.constant 4 : index
    %38 = memref.load %arg1[%c4] : memref<98xf32, #tpu.memory_space<smem>>
    %c5 = arith.constant 5 : index
    %39 = memref.load %arg1[%c5] : memref<98xf32, #tpu.memory_space<smem>>
    %c6 = arith.constant 6 : index
    %40 = memref.load %arg1[%c6] : memref<98xf32, #tpu.memory_space<smem>>
    %c7 = arith.constant 7 : index
    %41 = memref.load %arg1[%c7] : memref<98xf32, #tpu.memory_space<smem>>
    %c8 = arith.constant 8 : index
    %42 = memref.load %arg1[%c8] : memref<98xf32, #tpu.memory_space<smem>>
    %c9 = arith.constant 9 : index
    %43 = memref.load %arg1[%c9] : memref<98xf32, #tpu.memory_space<smem>>
    %c10 = arith.constant 10 : index
    %44 = memref.load %arg1[%c10] : memref<98xf32, #tpu.memory_space<smem>>
    %c11 = arith.constant 11 : index
    %45 = memref.load %arg1[%c11] : memref<98xf32, #tpu.memory_space<smem>>
    %c12 = arith.constant 12 : index
    %46 = memref.load %arg1[%c12] : memref<98xf32, #tpu.memory_space<smem>>
    %c13 = arith.constant 13 : index
    %47 = memref.load %arg1[%c13] : memref<98xf32, #tpu.memory_space<smem>>
    %c14 = arith.constant 14 : index
    %48 = memref.load %arg1[%c14] : memref<98xf32, #tpu.memory_space<smem>>
    %c15 = arith.constant 15 : index
    %49 = memref.load %arg1[%c15] : memref<98xf32, #tpu.memory_space<smem>>
    %c16 = arith.constant 16 : index
    %50 = memref.load %arg1[%c16] : memref<98xf32, #tpu.memory_space<smem>>
    %c17 = arith.constant 17 : index
    %51 = memref.load %arg1[%c17] : memref<98xf32, #tpu.memory_space<smem>>
    %c18 = arith.constant 18 : index
    %52 = memref.load %arg1[%c18] : memref<98xf32, #tpu.memory_space<smem>>
    %c19_41 = arith.constant 19 : index
    %53 = memref.load %arg1[%c19_41] : memref<98xf32, #tpu.memory_space<smem>>
    %c20 = arith.constant 20 : index
    %54 = memref.load %arg1[%c20] : memref<98xf32, #tpu.memory_space<smem>>
    %c21 = arith.constant 21 : index
    %55 = memref.load %arg1[%c21] : memref<98xf32, #tpu.memory_space<smem>>
    %c22 = arith.constant 22 : index
    %56 = memref.load %arg1[%c22] : memref<98xf32, #tpu.memory_space<smem>>
    %c23 = arith.constant 23 : index
    %57 = memref.load %arg1[%c23] : memref<98xf32, #tpu.memory_space<smem>>
    %c24 = arith.constant 24 : index
    %58 = memref.load %arg1[%c24] : memref<98xf32, #tpu.memory_space<smem>>
    %c25 = arith.constant 25 : index
    %59 = memref.load %arg1[%c25] : memref<98xf32, #tpu.memory_space<smem>>
    %c26 = arith.constant 26 : index
    %60 = memref.load %arg1[%c26] : memref<98xf32, #tpu.memory_space<smem>>
    %c27 = arith.constant 27 : index
    %61 = memref.load %arg1[%c27] : memref<98xf32, #tpu.memory_space<smem>>
    %c28 = arith.constant 28 : index
    %62 = memref.load %arg1[%c28] : memref<98xf32, #tpu.memory_space<smem>>
    %c29 = arith.constant 29 : index
    %63 = memref.load %arg1[%c29] : memref<98xf32, #tpu.memory_space<smem>>
    %c30 = arith.constant 30 : index
    %64 = memref.load %arg1[%c30] : memref<98xf32, #tpu.memory_space<smem>>
    %c31 = arith.constant 31 : index
    %65 = memref.load %arg1[%c31] : memref<98xf32, #tpu.memory_space<smem>>
    %c32 = arith.constant 32 : index
    %66 = memref.load %arg1[%c32] : memref<98xf32, #tpu.memory_space<smem>>
    %c33 = arith.constant 33 : index
    %67 = memref.load %arg1[%c33] : memref<98xf32, #tpu.memory_space<smem>>
    %c34 = arith.constant 34 : index
    %68 = memref.load %arg1[%c34] : memref<98xf32, #tpu.memory_space<smem>>
    %c35 = arith.constant 35 : index
    %69 = memref.load %arg1[%c35] : memref<98xf32, #tpu.memory_space<smem>>
    %c36 = arith.constant 36 : index
    %70 = memref.load %arg1[%c36] : memref<98xf32, #tpu.memory_space<smem>>
    %c37 = arith.constant 37 : index
    %71 = memref.load %arg1[%c37] : memref<98xf32, #tpu.memory_space<smem>>
    %c38 = arith.constant 38 : index
    %72 = memref.load %arg1[%c38] : memref<98xf32, #tpu.memory_space<smem>>
    %c39 = arith.constant 39 : index
    %73 = memref.load %arg1[%c39] : memref<98xf32, #tpu.memory_space<smem>>
    %c40 = arith.constant 40 : index
    %74 = memref.load %arg1[%c40] : memref<98xf32, #tpu.memory_space<smem>>
    %c41 = arith.constant 41 : index
    %75 = memref.load %arg1[%c41] : memref<98xf32, #tpu.memory_space<smem>>
    %c42 = arith.constant 42 : index
    %76 = memref.load %arg1[%c42] : memref<98xf32, #tpu.memory_space<smem>>
    %c43 = arith.constant 43 : index
    %77 = memref.load %arg1[%c43] : memref<98xf32, #tpu.memory_space<smem>>
    %c44 = arith.constant 44 : index
    %78 = memref.load %arg1[%c44] : memref<98xf32, #tpu.memory_space<smem>>
    %c45 = arith.constant 45 : index
    %79 = memref.load %arg1[%c45] : memref<98xf32, #tpu.memory_space<smem>>
    %c46 = arith.constant 46 : index
    %80 = memref.load %arg1[%c46] : memref<98xf32, #tpu.memory_space<smem>>
    %c47 = arith.constant 47 : index
    %81 = memref.load %arg1[%c47] : memref<98xf32, #tpu.memory_space<smem>>
    %c48 = arith.constant 48 : index
    %82 = memref.load %arg1[%c48] : memref<98xf32, #tpu.memory_space<smem>>
    %c49 = arith.constant 49 : index
    %83 = memref.load %arg1[%c49] : memref<98xf32, #tpu.memory_space<smem>>
    %c50 = arith.constant 50 : index
    %84 = memref.load %arg1[%c50] : memref<98xf32, #tpu.memory_space<smem>>
    %c51 = arith.constant 51 : index
    %85 = memref.load %arg1[%c51] : memref<98xf32, #tpu.memory_space<smem>>
    %c52 = arith.constant 52 : index
    %86 = memref.load %arg1[%c52] : memref<98xf32, #tpu.memory_space<smem>>
    %c53 = arith.constant 53 : index
    %87 = memref.load %arg1[%c53] : memref<98xf32, #tpu.memory_space<smem>>
    %c54 = arith.constant 54 : index
    %88 = memref.load %arg1[%c54] : memref<98xf32, #tpu.memory_space<smem>>
    %c55 = arith.constant 55 : index
    %89 = memref.load %arg1[%c55] : memref<98xf32, #tpu.memory_space<smem>>
    %c56 = arith.constant 56 : index
    %90 = memref.load %arg1[%c56] : memref<98xf32, #tpu.memory_space<smem>>
    %c57 = arith.constant 57 : index
    %91 = memref.load %arg1[%c57] : memref<98xf32, #tpu.memory_space<smem>>
    %c58 = arith.constant 58 : index
    %92 = memref.load %arg1[%c58] : memref<98xf32, #tpu.memory_space<smem>>
    %c59 = arith.constant 59 : index
    %93 = memref.load %arg1[%c59] : memref<98xf32, #tpu.memory_space<smem>>
    %c60 = arith.constant 60 : index
    %94 = memref.load %arg1[%c60] : memref<98xf32, #tpu.memory_space<smem>>
    %c61 = arith.constant 61 : index
    %95 = memref.load %arg1[%c61] : memref<98xf32, #tpu.memory_space<smem>>
    %c62 = arith.constant 62 : index
    %96 = memref.load %arg1[%c62] : memref<98xf32, #tpu.memory_space<smem>>
    %c63 = arith.constant 63 : index
    %97 = memref.load %arg1[%c63] : memref<98xf32, #tpu.memory_space<smem>>
    %c64 = arith.constant 64 : index
    %98 = memref.load %arg1[%c64] : memref<98xf32, #tpu.memory_space<smem>>
    %c65 = arith.constant 65 : index
    %99 = memref.load %arg1[%c65] : memref<98xf32, #tpu.memory_space<smem>>
    %c66 = arith.constant 66 : index
    %100 = memref.load %arg1[%c66] : memref<98xf32, #tpu.memory_space<smem>>
    %c67 = arith.constant 67 : index
    %101 = memref.load %arg1[%c67] : memref<98xf32, #tpu.memory_space<smem>>
    %c68 = arith.constant 68 : index
    %102 = memref.load %arg1[%c68] : memref<98xf32, #tpu.memory_space<smem>>
    %c69 = arith.constant 69 : index
    %103 = memref.load %arg1[%c69] : memref<98xf32, #tpu.memory_space<smem>>
    %c70 = arith.constant 70 : index
    %104 = memref.load %arg1[%c70] : memref<98xf32, #tpu.memory_space<smem>>
    %c71 = arith.constant 71 : index
    %105 = memref.load %arg1[%c71] : memref<98xf32, #tpu.memory_space<smem>>
    %c72 = arith.constant 72 : index
    %106 = memref.load %arg1[%c72] : memref<98xf32, #tpu.memory_space<smem>>
    %c73 = arith.constant 73 : index
    %107 = memref.load %arg1[%c73] : memref<98xf32, #tpu.memory_space<smem>>
    %c74 = arith.constant 74 : index
    %108 = memref.load %arg1[%c74] : memref<98xf32, #tpu.memory_space<smem>>
    %c75 = arith.constant 75 : index
    %109 = memref.load %arg1[%c75] : memref<98xf32, #tpu.memory_space<smem>>
    %c76 = arith.constant 76 : index
    %110 = memref.load %arg1[%c76] : memref<98xf32, #tpu.memory_space<smem>>
    %c77 = arith.constant 77 : index
    %111 = memref.load %arg1[%c77] : memref<98xf32, #tpu.memory_space<smem>>
    %c78 = arith.constant 78 : index
    %112 = memref.load %arg1[%c78] : memref<98xf32, #tpu.memory_space<smem>>
    %c79 = arith.constant 79 : index
    %113 = memref.load %arg1[%c79] : memref<98xf32, #tpu.memory_space<smem>>
    %c80 = arith.constant 80 : index
    %114 = memref.load %arg1[%c80] : memref<98xf32, #tpu.memory_space<smem>>
    %c81 = arith.constant 81 : index
    %115 = memref.load %arg1[%c81] : memref<98xf32, #tpu.memory_space<smem>>
    %c82 = arith.constant 82 : index
    %116 = memref.load %arg1[%c82] : memref<98xf32, #tpu.memory_space<smem>>
    %c83 = arith.constant 83 : index
    %117 = memref.load %arg1[%c83] : memref<98xf32, #tpu.memory_space<smem>>
    %c84 = arith.constant 84 : index
    %118 = memref.load %arg1[%c84] : memref<98xf32, #tpu.memory_space<smem>>
    %c85 = arith.constant 85 : index
    %119 = memref.load %arg1[%c85] : memref<98xf32, #tpu.memory_space<smem>>
    %c86 = arith.constant 86 : index
    %120 = memref.load %arg1[%c86] : memref<98xf32, #tpu.memory_space<smem>>
    %c87 = arith.constant 87 : index
    %121 = memref.load %arg1[%c87] : memref<98xf32, #tpu.memory_space<smem>>
    %c88 = arith.constant 88 : index
    %122 = memref.load %arg1[%c88] : memref<98xf32, #tpu.memory_space<smem>>
    %c89 = arith.constant 89 : index
    %123 = memref.load %arg1[%c89] : memref<98xf32, #tpu.memory_space<smem>>
    %c90 = arith.constant 90 : index
    %124 = memref.load %arg1[%c90] : memref<98xf32, #tpu.memory_space<smem>>
    %c91 = arith.constant 91 : index
    %125 = memref.load %arg1[%c91] : memref<98xf32, #tpu.memory_space<smem>>
    %c92 = arith.constant 92 : index
    %126 = memref.load %arg1[%c92] : memref<98xf32, #tpu.memory_space<smem>>
    %c93 = arith.constant 93 : index
    %127 = memref.load %arg1[%c93] : memref<98xf32, #tpu.memory_space<smem>>
    %c94 = arith.constant 94 : index
    %128 = memref.load %arg1[%c94] : memref<98xf32, #tpu.memory_space<smem>>
    %c95 = arith.constant 95 : index
    %129 = memref.load %arg1[%c95] : memref<98xf32, #tpu.memory_space<smem>>
    %c96 = arith.constant 96 : index
    %130 = memref.load %arg1[%c96] : memref<98xf32, #tpu.memory_space<smem>>
    %c97 = arith.constant 97 : index
    %131 = memref.load %arg1[%c97] : memref<98xf32, #tpu.memory_space<smem>>
    %c0_42 = arith.constant 0 : index
    %c0_43 = arith.constant 0 : index
    %132 = vector.load %arg4[%c0_42, %c0_43] : memref<22x22xf32, #tpu.memory_space<vmem>>, vector<22x16xf32>
    %c0_44 = arith.constant 0 : index
    %c1_45 = arith.constant 1 : index
    %133 = vector.load %arg4[%c0_44, %c1_45] : memref<22x22xf32, #tpu.memory_space<vmem>>, vector<22x16xf32>
    %c0_46 = arith.constant 0 : index
    %c2_47 = arith.constant 2 : index
    %134 = vector.load %arg4[%c0_46, %c2_47] : memref<22x22xf32, #tpu.memory_space<vmem>>, vector<22x16xf32>
    %c0_48 = arith.constant 0 : index
    %c3_49 = arith.constant 3 : index
    %135 = vector.load %arg4[%c0_48, %c3_49] : memref<22x22xf32, #tpu.memory_space<vmem>>, vector<22x16xf32>
    %c0_50 = arith.constant 0 : index
    %c4_51 = arith.constant 4 : index
    %136 = vector.load %arg4[%c0_50, %c4_51] : memref<22x22xf32, #tpu.memory_space<vmem>>, vector<22x16xf32>
    %c0_52 = arith.constant 0 : index
    %c5_53 = arith.constant 5 : index
    %137 = vector.load %arg4[%c0_52, %c5_53] : memref<22x22xf32, #tpu.memory_space<vmem>>, vector<22x16xf32>
    %c0_54 = arith.constant 0 : index
    %c6_55 = arith.constant 6 : index
    %138 = vector.load %arg4[%c0_54, %c6_55] : memref<22x22xf32, #tpu.memory_space<vmem>>, vector<22x16xf32>
    %c0_56 = arith.constant 0 : index
    %c0_57 = arith.constant 0 : index
    %139 = vector.load %arg5[%c0_56, %c0_57] : memref<22x22xf32, #tpu.memory_space<vmem>>, vector<22x16xf32>
    %c0_58 = arith.constant 0 : index
    %c1_59 = arith.constant 1 : index
    %140 = vector.load %arg5[%c0_58, %c1_59] : memref<22x22xf32, #tpu.memory_space<vmem>>, vector<22x16xf32>
    %c0_60 = arith.constant 0 : index
    %c2_61 = arith.constant 2 : index
    %141 = vector.load %arg5[%c0_60, %c2_61] : memref<22x22xf32, #tpu.memory_space<vmem>>, vector<22x16xf32>
    %c0_62 = arith.constant 0 : index
    %c3_63 = arith.constant 3 : index
    %142 = vector.load %arg5[%c0_62, %c3_63] : memref<22x22xf32, #tpu.memory_space<vmem>>, vector<22x16xf32>
    %c0_64 = arith.constant 0 : index
    %c4_65 = arith.constant 4 : index
    %143 = vector.load %arg5[%c0_64, %c4_65] : memref<22x22xf32, #tpu.memory_space<vmem>>, vector<22x16xf32>
    %c0_66 = arith.constant 0 : index
    %c5_67 = arith.constant 5 : index
    %144 = vector.load %arg5[%c0_66, %c5_67] : memref<22x22xf32, #tpu.memory_space<vmem>>, vector<22x16xf32>
    %c0_68 = arith.constant 0 : index
    %c6_69 = arith.constant 6 : index
    %145 = vector.load %arg5[%c0_68, %c6_69] : memref<22x22xf32, #tpu.memory_space<vmem>>, vector<22x16xf32>
    %cst_70 = arith.constant 0.000000e+00 : f32
    %146 = vector.broadcast %cst_70 : f32 to vector<16x16xf32>
    %147 = vector.extract_strided_slice %132 {offsets = [0, 0], sizes = [16, 16], strides = [1, 1]} : vector<22x16xf32> to vector<16x16xf32>
    %148 = vector.broadcast %34 : f32 to vector<16x16xf32>
    %149 = arith.mulf %148, %147 : vector<16x16xf32>
    %150 = arith.addf %146, %149 : vector<16x16xf32>
    %151 = vector.extract_strided_slice %139 {offsets = [0, 0], sizes = [16, 16], strides = [1, 1]} : vector<22x16xf32> to vector<16x16xf32>
    %152 = vector.broadcast %83 : f32 to vector<16x16xf32>
    %153 = arith.mulf %152, %151 : vector<16x16xf32>
    %154 = arith.addf %150, %153 : vector<16x16xf32>
    %155 = vector.extract_strided_slice %133 {offsets = [0, 0], sizes = [16, 16], strides = [1, 1]} : vector<22x16xf32> to vector<16x16xf32>
    %156 = vector.broadcast %35 : f32 to vector<16x16xf32>
    %157 = arith.mulf %156, %155 : vector<16x16xf32>
    %158 = arith.addf %154, %157 : vector<16x16xf32>
    %159 = vector.extract_strided_slice %140 {offsets = [0, 0], sizes = [16, 16], strides = [1, 1]} : vector<22x16xf32> to vector<16x16xf32>
    %160 = vector.broadcast %84 : f32 to vector<16x16xf32>
    %161 = arith.mulf %160, %159 : vector<16x16xf32>
    %162 = arith.addf %158, %161 : vector<16x16xf32>
    %163 = vector.extract_strided_slice %134 {offsets = [0, 0], sizes = [16, 16], strides = [1, 1]} : vector<22x16xf32> to vector<16x16xf32>
    %164 = vector.broadcast %36 : f32 to vector<16x16xf32>
    %165 = arith.mulf %164, %163 : vector<16x16xf32>
    %166 = arith.addf %162, %165 : vector<16x16xf32>
    %167 = vector.extract_strided_slice %141 {offsets = [0, 0], sizes = [16, 16], strides = [1, 1]} : vector<22x16xf32> to vector<16x16xf32>
    %168 = vector.broadcast %85 : f32 to vector<16x16xf32>
    %169 = arith.mulf %168, %167 : vector<16x16xf32>
    %170 = arith.addf %166, %169 : vector<16x16xf32>
    %171 = vector.extract_strided_slice %135 {offsets = [0, 0], sizes = [16, 16], strides = [1, 1]} : vector<22x16xf32> to vector<16x16xf32>
    %172 = vector.broadcast %37 : f32 to vector<16x16xf32>
    %173 = arith.mulf %172, %171 : vector<16x16xf32>
    %174 = arith.addf %170, %173 : vector<16x16xf32>
    %175 = vector.extract_strided_slice %142 {offsets = [0, 0], sizes = [16, 16], strides = [1, 1]} : vector<22x16xf32> to vector<16x16xf32>
    %176 = vector.broadcast %86 : f32 to vector<16x16xf32>
    %177 = arith.mulf %176, %175 : vector<16x16xf32>
    %178 = arith.addf %174, %177 : vector<16x16xf32>
    %179 = vector.extract_strided_slice %136 {offsets = [0, 0], sizes = [16, 16], strides = [1, 1]} : vector<22x16xf32> to vector<16x16xf32>
    %180 = vector.broadcast %38 : f32 to vector<16x16xf32>
    %181 = arith.mulf %180, %179 : vector<16x16xf32>
    %182 = arith.addf %178, %181 : vector<16x16xf32>
    %183 = vector.extract_strided_slice %143 {offsets = [0, 0], sizes = [16, 16], strides = [1, 1]} : vector<22x16xf32> to vector<16x16xf32>
    %184 = vector.broadcast %87 : f32 to vector<16x16xf32>
    %185 = arith.mulf %184, %183 : vector<16x16xf32>
    %186 = arith.addf %182, %185 : vector<16x16xf32>
    %187 = vector.extract_strided_slice %137 {offsets = [0, 0], sizes = [16, 16], strides = [1, 1]} : vector<22x16xf32> to vector<16x16xf32>
    %188 = vector.broadcast %39 : f32 to vector<16x16xf32>
    %189 = arith.mulf %188, %187 : vector<16x16xf32>
    %190 = arith.addf %186, %189 : vector<16x16xf32>
    %191 = vector.extract_strided_slice %144 {offsets = [0, 0], sizes = [16, 16], strides = [1, 1]} : vector<22x16xf32> to vector<16x16xf32>
    %192 = vector.broadcast %88 : f32 to vector<16x16xf32>
    %193 = arith.mulf %192, %191 : vector<16x16xf32>
    %194 = arith.addf %190, %193 : vector<16x16xf32>
    %195 = vector.extract_strided_slice %138 {offsets = [0, 0], sizes = [16, 16], strides = [1, 1]} : vector<22x16xf32> to vector<16x16xf32>
    %196 = vector.broadcast %40 : f32 to vector<16x16xf32>
    %197 = arith.mulf %196, %195 : vector<16x16xf32>
    %198 = arith.addf %194, %197 : vector<16x16xf32>
    %199 = vector.extract_strided_slice %145 {offsets = [0, 0], sizes = [16, 16], strides = [1, 1]} : vector<22x16xf32> to vector<16x16xf32>
    %200 = vector.broadcast %89 : f32 to vector<16x16xf32>
    %201 = arith.mulf %200, %199 : vector<16x16xf32>
    %202 = arith.addf %198, %201 : vector<16x16xf32>
    %203 = vector.extract_strided_slice %132 {offsets = [1, 0], sizes = [16, 16], strides = [1, 1]} : vector<22x16xf32> to vector<16x16xf32>
    %204 = vector.broadcast %41 : f32 to vector<16x16xf32>
    %205 = arith.mulf %204, %203 : vector<16x16xf32>
    %206 = arith.addf %202, %205 : vector<16x16xf32>
    %207 = vector.extract_strided_slice %139 {offsets = [1, 0], sizes = [16, 16], strides = [1, 1]} : vector<22x16xf32> to vector<16x16xf32>
    %208 = vector.broadcast %90 : f32 to vector<16x16xf32>
    %209 = arith.mulf %208, %207 : vector<16x16xf32>
    %210 = arith.addf %206, %209 : vector<16x16xf32>
    %211 = vector.extract_strided_slice %133 {offsets = [1, 0], sizes = [16, 16], strides = [1, 1]} : vector<22x16xf32> to vector<16x16xf32>
    %212 = vector.broadcast %42 : f32 to vector<16x16xf32>
    %213 = arith.mulf %212, %211 : vector<16x16xf32>
    %214 = arith.addf %210, %213 : vector<16x16xf32>
    %215 = vector.extract_strided_slice %140 {offsets = [1, 0], sizes = [16, 16], strides = [1, 1]} : vector<22x16xf32> to vector<16x16xf32>
    %216 = vector.broadcast %91 : f32 to vector<16x16xf32>
    %217 = arith.mulf %216, %215 : vector<16x16xf32>
    %218 = arith.addf %214, %217 : vector<16x16xf32>
    %219 = vector.extract_strided_slice %134 {offsets = [1, 0], sizes = [16, 16], strides = [1, 1]} : vector<22x16xf32> to vector<16x16xf32>
    %220 = vector.broadcast %43 : f32 to vector<16x16xf32>
    %221 = arith.mulf %220, %219 : vector<16x16xf32>
    %222 = arith.addf %218, %221 : vector<16x16xf32>
    %223 = vector.extract_strided_slice %141 {offsets = [1, 0], sizes = [16, 16], strides = [1, 1]} : vector<22x16xf32> to vector<16x16xf32>
    %224 = vector.broadcast %92 : f32 to vector<16x16xf32>
    %225 = arith.mulf %224, %223 : vector<16x16xf32>
    %226 = arith.addf %222, %225 : vector<16x16xf32>
    %227 = vector.extract_strided_slice %135 {offsets = [1, 0], sizes = [16, 16], strides = [1, 1]} : vector<22x16xf32> to vector<16x16xf32>
    %228 = vector.broadcast %44 : f32 to vector<16x16xf32>
    %229 = arith.mulf %228, %227 : vector<16x16xf32>
    %230 = arith.addf %226, %229 : vector<16x16xf32>
    %231 = vector.extract_strided_slice %142 {offsets = [1, 0], sizes = [16, 16], strides = [1, 1]} : vector<22x16xf32> to vector<16x16xf32>
    %232 = vector.broadcast %93 : f32 to vector<16x16xf32>
    %233 = arith.mulf %232, %231 : vector<16x16xf32>
    %234 = arith.addf %230, %233 : vector<16x16xf32>
    %235 = vector.extract_strided_slice %136 {offsets = [1, 0], sizes = [16, 16], strides = [1, 1]} : vector<22x16xf32> to vector<16x16xf32>
    %236 = vector.broadcast %45 : f32 to vector<16x16xf32>
    %237 = arith.mulf %236, %235 : vector<16x16xf32>
    %238 = arith.addf %234, %237 : vector<16x16xf32>
    %239 = vector.extract_strided_slice %143 {offsets = [1, 0], sizes = [16, 16], strides = [1, 1]} : vector<22x16xf32> to vector<16x16xf32>
    %240 = vector.broadcast %94 : f32 to vector<16x16xf32>
    %241 = arith.mulf %240, %239 : vector<16x16xf32>
    %242 = arith.addf %238, %241 : vector<16x16xf32>
    %243 = vector.extract_strided_slice %137 {offsets = [1, 0], sizes = [16, 16], strides = [1, 1]} : vector<22x16xf32> to vector<16x16xf32>
    %244 = vector.broadcast %46 : f32 to vector<16x16xf32>
    %245 = arith.mulf %244, %243 : vector<16x16xf32>
    %246 = arith.addf %242, %245 : vector<16x16xf32>
    %247 = vector.extract_strided_slice %144 {offsets = [1, 0], sizes = [16, 16], strides = [1, 1]} : vector<22x16xf32> to vector<16x16xf32>
    %248 = vector.broadcast %95 : f32 to vector<16x16xf32>
    %249 = arith.mulf %248, %247 : vector<16x16xf32>
    %250 = arith.addf %246, %249 : vector<16x16xf32>
    %251 = vector.extract_strided_slice %138 {offsets = [1, 0], sizes = [16, 16], strides = [1, 1]} : vector<22x16xf32> to vector<16x16xf32>
    %252 = vector.broadcast %47 : f32 to vector<16x16xf32>
    %253 = arith.mulf %252, %251 : vector<16x16xf32>
    %254 = arith.addf %250, %253 : vector<16x16xf32>
    %255 = vector.extract_strided_slice %145 {offsets = [1, 0], sizes = [16, 16], strides = [1, 1]} : vector<22x16xf32> to vector<16x16xf32>
    %256 = vector.broadcast %96 : f32 to vector<16x16xf32>
    %257 = arith.mulf %256, %255 : vector<16x16xf32>
    %258 = arith.addf %254, %257 : vector<16x16xf32>
    %259 = vector.extract_strided_slice %132 {offsets = [2, 0], sizes = [16, 16], strides = [1, 1]} : vector<22x16xf32> to vector<16x16xf32>
    %260 = vector.broadcast %48 : f32 to vector<16x16xf32>
    %261 = arith.mulf %260, %259 : vector<16x16xf32>
    %262 = arith.addf %258, %261 : vector<16x16xf32>
    %263 = vector.extract_strided_slice %139 {offsets = [2, 0], sizes = [16, 16], strides = [1, 1]} : vector<22x16xf32> to vector<16x16xf32>
    %264 = vector.broadcast %97 : f32 to vector<16x16xf32>
    %265 = arith.mulf %264, %263 : vector<16x16xf32>
    %266 = arith.addf %262, %265 : vector<16x16xf32>
    %267 = vector.extract_strided_slice %133 {offsets = [2, 0], sizes = [16, 16], strides = [1, 1]} : vector<22x16xf32> to vector<16x16xf32>
    %268 = vector.broadcast %49 : f32 to vector<16x16xf32>
    %269 = arith.mulf %268, %267 : vector<16x16xf32>
    %270 = arith.addf %266, %269 : vector<16x16xf32>
    %271 = vector.extract_strided_slice %140 {offsets = [2, 0], sizes = [16, 16], strides = [1, 1]} : vector<22x16xf32> to vector<16x16xf32>
    %272 = vector.broadcast %98 : f32 to vector<16x16xf32>
    %273 = arith.mulf %272, %271 : vector<16x16xf32>
    %274 = arith.addf %270, %273 : vector<16x16xf32>
    %275 = vector.extract_strided_slice %134 {offsets = [2, 0], sizes = [16, 16], strides = [1, 1]} : vector<22x16xf32> to vector<16x16xf32>
    %276 = vector.broadcast %50 : f32 to vector<16x16xf32>
    %277 = arith.mulf %276, %275 : vector<16x16xf32>
    %278 = arith.addf %274, %277 : vector<16x16xf32>
    %279 = vector.extract_strided_slice %141 {offsets = [2, 0], sizes = [16, 16], strides = [1, 1]} : vector<22x16xf32> to vector<16x16xf32>
    %280 = vector.broadcast %99 : f32 to vector<16x16xf32>
    %281 = arith.mulf %280, %279 : vector<16x16xf32>
    %282 = arith.addf %278, %281 : vector<16x16xf32>
    %283 = vector.extract_strided_slice %135 {offsets = [2, 0], sizes = [16, 16], strides = [1, 1]} : vector<22x16xf32> to vector<16x16xf32>
    %284 = vector.broadcast %51 : f32 to vector<16x16xf32>
    %285 = arith.mulf %284, %283 : vector<16x16xf32>
    %286 = arith.addf %282, %285 : vector<16x16xf32>
    %287 = vector.extract_strided_slice %142 {offsets = [2, 0], sizes = [16, 16], strides = [1, 1]} : vector<22x16xf32> to vector<16x16xf32>
    %288 = vector.broadcast %100 : f32 to vector<16x16xf32>
    %289 = arith.mulf %288, %287 : vector<16x16xf32>
    %290 = arith.addf %286, %289 : vector<16x16xf32>
    %291 = vector.extract_strided_slice %136 {offsets = [2, 0], sizes = [16, 16], strides = [1, 1]} : vector<22x16xf32> to vector<16x16xf32>
    %292 = vector.broadcast %52 : f32 to vector<16x16xf32>
    %293 = arith.mulf %292, %291 : vector<16x16xf32>
    %294 = arith.addf %290, %293 : vector<16x16xf32>
    %295 = vector.extract_strided_slice %143 {offsets = [2, 0], sizes = [16, 16], strides = [1, 1]} : vector<22x16xf32> to vector<16x16xf32>
    %296 = vector.broadcast %101 : f32 to vector<16x16xf32>
    %297 = arith.mulf %296, %295 : vector<16x16xf32>
    %298 = arith.addf %294, %297 : vector<16x16xf32>
    %299 = vector.extract_strided_slice %137 {offsets = [2, 0], sizes = [16, 16], strides = [1, 1]} : vector<22x16xf32> to vector<16x16xf32>
    %300 = vector.broadcast %53 : f32 to vector<16x16xf32>
    %301 = arith.mulf %300, %299 : vector<16x16xf32>
    %302 = arith.addf %298, %301 : vector<16x16xf32>
    %303 = vector.extract_strided_slice %144 {offsets = [2, 0], sizes = [16, 16], strides = [1, 1]} : vector<22x16xf32> to vector<16x16xf32>
    %304 = vector.broadcast %102 : f32 to vector<16x16xf32>
    %305 = arith.mulf %304, %303 : vector<16x16xf32>
    %306 = arith.addf %302, %305 : vector<16x16xf32>
    %307 = vector.extract_strided_slice %138 {offsets = [2, 0], sizes = [16, 16], strides = [1, 1]} : vector<22x16xf32> to vector<16x16xf32>
    %308 = vector.broadcast %54 : f32 to vector<16x16xf32>
    %309 = arith.mulf %308, %307 : vector<16x16xf32>
    %310 = arith.addf %306, %309 : vector<16x16xf32>
    %311 = vector.extract_strided_slice %145 {offsets = [2, 0], sizes = [16, 16], strides = [1, 1]} : vector<22x16xf32> to vector<16x16xf32>
    %312 = vector.broadcast %103 : f32 to vector<16x16xf32>
    %313 = arith.mulf %312, %311 : vector<16x16xf32>
    %314 = arith.addf %310, %313 : vector<16x16xf32>
    %315 = vector.extract_strided_slice %132 {offsets = [3, 0], sizes = [16, 16], strides = [1, 1]} : vector<22x16xf32> to vector<16x16xf32>
    %316 = vector.broadcast %55 : f32 to vector<16x16xf32>
    %317 = arith.mulf %316, %315 : vector<16x16xf32>
    %318 = arith.addf %314, %317 : vector<16x16xf32>
    %319 = vector.extract_strided_slice %139 {offsets = [3, 0], sizes = [16, 16], strides = [1, 1]} : vector<22x16xf32> to vector<16x16xf32>
    %320 = vector.broadcast %104 : f32 to vector<16x16xf32>
    %321 = arith.mulf %320, %319 : vector<16x16xf32>
    %322 = arith.addf %318, %321 : vector<16x16xf32>
    %323 = vector.extract_strided_slice %133 {offsets = [3, 0], sizes = [16, 16], strides = [1, 1]} : vector<22x16xf32> to vector<16x16xf32>
    %324 = vector.broadcast %56 : f32 to vector<16x16xf32>
    %325 = arith.mulf %324, %323 : vector<16x16xf32>
    %326 = arith.addf %322, %325 : vector<16x16xf32>
    %327 = vector.extract_strided_slice %140 {offsets = [3, 0], sizes = [16, 16], strides = [1, 1]} : vector<22x16xf32> to vector<16x16xf32>
    %328 = vector.broadcast %105 : f32 to vector<16x16xf32>
    %329 = arith.mulf %328, %327 : vector<16x16xf32>
    %330 = arith.addf %326, %329 : vector<16x16xf32>
    %331 = vector.extract_strided_slice %134 {offsets = [3, 0], sizes = [16, 16], strides = [1, 1]} : vector<22x16xf32> to vector<16x16xf32>
    %332 = vector.broadcast %57 : f32 to vector<16x16xf32>
    %333 = arith.mulf %332, %331 : vector<16x16xf32>
    %334 = arith.addf %330, %333 : vector<16x16xf32>
    %335 = vector.extract_strided_slice %141 {offsets = [3, 0], sizes = [16, 16], strides = [1, 1]} : vector<22x16xf32> to vector<16x16xf32>
    %336 = vector.broadcast %106 : f32 to vector<16x16xf32>
    %337 = arith.mulf %336, %335 : vector<16x16xf32>
    %338 = arith.addf %334, %337 : vector<16x16xf32>
    %339 = vector.extract_strided_slice %135 {offsets = [3, 0], sizes = [16, 16], strides = [1, 1]} : vector<22x16xf32> to vector<16x16xf32>
    %340 = vector.broadcast %58 : f32 to vector<16x16xf32>
    %341 = arith.mulf %340, %339 : vector<16x16xf32>
    %342 = arith.addf %338, %341 : vector<16x16xf32>
    %343 = vector.extract_strided_slice %142 {offsets = [3, 0], sizes = [16, 16], strides = [1, 1]} : vector<22x16xf32> to vector<16x16xf32>
    %344 = vector.broadcast %107 : f32 to vector<16x16xf32>
    %345 = arith.mulf %344, %343 : vector<16x16xf32>
    %346 = arith.addf %342, %345 : vector<16x16xf32>
    %347 = vector.extract_strided_slice %136 {offsets = [3, 0], sizes = [16, 16], strides = [1, 1]} : vector<22x16xf32> to vector<16x16xf32>
    %348 = vector.broadcast %59 : f32 to vector<16x16xf32>
    %349 = arith.mulf %348, %347 : vector<16x16xf32>
    %350 = arith.addf %346, %349 : vector<16x16xf32>
    %351 = vector.extract_strided_slice %143 {offsets = [3, 0], sizes = [16, 16], strides = [1, 1]} : vector<22x16xf32> to vector<16x16xf32>
    %352 = vector.broadcast %108 : f32 to vector<16x16xf32>
    %353 = arith.mulf %352, %351 : vector<16x16xf32>
    %354 = arith.addf %350, %353 : vector<16x16xf32>
    %355 = vector.extract_strided_slice %137 {offsets = [3, 0], sizes = [16, 16], strides = [1, 1]} : vector<22x16xf32> to vector<16x16xf32>
    %356 = vector.broadcast %60 : f32 to vector<16x16xf32>
    %357 = arith.mulf %356, %355 : vector<16x16xf32>
    %358 = arith.addf %354, %357 : vector<16x16xf32>
    %359 = vector.extract_strided_slice %144 {offsets = [3, 0], sizes = [16, 16], strides = [1, 1]} : vector<22x16xf32> to vector<16x16xf32>
    %360 = vector.broadcast %109 : f32 to vector<16x16xf32>
    %361 = arith.mulf %360, %359 : vector<16x16xf32>
    %362 = arith.addf %358, %361 : vector<16x16xf32>
    %363 = vector.extract_strided_slice %138 {offsets = [3, 0], sizes = [16, 16], strides = [1, 1]} : vector<22x16xf32> to vector<16x16xf32>
    %364 = vector.broadcast %61 : f32 to vector<16x16xf32>
    %365 = arith.mulf %364, %363 : vector<16x16xf32>
    %366 = arith.addf %362, %365 : vector<16x16xf32>
    %367 = vector.extract_strided_slice %145 {offsets = [3, 0], sizes = [16, 16], strides = [1, 1]} : vector<22x16xf32> to vector<16x16xf32>
    %368 = vector.broadcast %110 : f32 to vector<16x16xf32>
    %369 = arith.mulf %368, %367 : vector<16x16xf32>
    %370 = arith.addf %366, %369 : vector<16x16xf32>
    %371 = vector.extract_strided_slice %132 {offsets = [4, 0], sizes = [16, 16], strides = [1, 1]} : vector<22x16xf32> to vector<16x16xf32>
    %372 = vector.broadcast %62 : f32 to vector<16x16xf32>
    %373 = arith.mulf %372, %371 : vector<16x16xf32>
    %374 = arith.addf %370, %373 : vector<16x16xf32>
    %375 = vector.extract_strided_slice %139 {offsets = [4, 0], sizes = [16, 16], strides = [1, 1]} : vector<22x16xf32> to vector<16x16xf32>
    %376 = vector.broadcast %111 : f32 to vector<16x16xf32>
    %377 = arith.mulf %376, %375 : vector<16x16xf32>
    %378 = arith.addf %374, %377 : vector<16x16xf32>
    %379 = vector.extract_strided_slice %133 {offsets = [4, 0], sizes = [16, 16], strides = [1, 1]} : vector<22x16xf32> to vector<16x16xf32>
    %380 = vector.broadcast %63 : f32 to vector<16x16xf32>
    %381 = arith.mulf %380, %379 : vector<16x16xf32>
    %382 = arith.addf %378, %381 : vector<16x16xf32>
    %383 = vector.extract_strided_slice %140 {offsets = [4, 0], sizes = [16, 16], strides = [1, 1]} : vector<22x16xf32> to vector<16x16xf32>
    %384 = vector.broadcast %112 : f32 to vector<16x16xf32>
    %385 = arith.mulf %384, %383 : vector<16x16xf32>
    %386 = arith.addf %382, %385 : vector<16x16xf32>
    %387 = vector.extract_strided_slice %134 {offsets = [4, 0], sizes = [16, 16], strides = [1, 1]} : vector<22x16xf32> to vector<16x16xf32>
    %388 = vector.broadcast %64 : f32 to vector<16x16xf32>
    %389 = arith.mulf %388, %387 : vector<16x16xf32>
    %390 = arith.addf %386, %389 : vector<16x16xf32>
    %391 = vector.extract_strided_slice %141 {offsets = [4, 0], sizes = [16, 16], strides = [1, 1]} : vector<22x16xf32> to vector<16x16xf32>
    %392 = vector.broadcast %113 : f32 to vector<16x16xf32>
    %393 = arith.mulf %392, %391 : vector<16x16xf32>
    %394 = arith.addf %390, %393 : vector<16x16xf32>
    %395 = vector.extract_strided_slice %135 {offsets = [4, 0], sizes = [16, 16], strides = [1, 1]} : vector<22x16xf32> to vector<16x16xf32>
    %396 = vector.broadcast %65 : f32 to vector<16x16xf32>
    %397 = arith.mulf %396, %395 : vector<16x16xf32>
    %398 = arith.addf %394, %397 : vector<16x16xf32>
    %399 = vector.extract_strided_slice %142 {offsets = [4, 0], sizes = [16, 16], strides = [1, 1]} : vector<22x16xf32> to vector<16x16xf32>
    %400 = vector.broadcast %114 : f32 to vector<16x16xf32>
    %401 = arith.mulf %400, %399 : vector<16x16xf32>
    %402 = arith.addf %398, %401 : vector<16x16xf32>
    %403 = vector.extract_strided_slice %136 {offsets = [4, 0], sizes = [16, 16], strides = [1, 1]} : vector<22x16xf32> to vector<16x16xf32>
    %404 = vector.broadcast %66 : f32 to vector<16x16xf32>
    %405 = arith.mulf %404, %403 : vector<16x16xf32>
    %406 = arith.addf %402, %405 : vector<16x16xf32>
    %407 = vector.extract_strided_slice %143 {offsets = [4, 0], sizes = [16, 16], strides = [1, 1]} : vector<22x16xf32> to vector<16x16xf32>
    %408 = vector.broadcast %115 : f32 to vector<16x16xf32>
    %409 = arith.mulf %408, %407 : vector<16x16xf32>
    %410 = arith.addf %406, %409 : vector<16x16xf32>
    %411 = vector.extract_strided_slice %137 {offsets = [4, 0], sizes = [16, 16], strides = [1, 1]} : vector<22x16xf32> to vector<16x16xf32>
    %412 = vector.broadcast %67 : f32 to vector<16x16xf32>
    %413 = arith.mulf %412, %411 : vector<16x16xf32>
    %414 = arith.addf %410, %413 : vector<16x16xf32>
    %415 = vector.extract_strided_slice %144 {offsets = [4, 0], sizes = [16, 16], strides = [1, 1]} : vector<22x16xf32> to vector<16x16xf32>
    %416 = vector.broadcast %116 : f32 to vector<16x16xf32>
    %417 = arith.mulf %416, %415 : vector<16x16xf32>
    %418 = arith.addf %414, %417 : vector<16x16xf32>
    %419 = vector.extract_strided_slice %138 {offsets = [4, 0], sizes = [16, 16], strides = [1, 1]} : vector<22x16xf32> to vector<16x16xf32>
    %420 = vector.broadcast %68 : f32 to vector<16x16xf32>
    %421 = arith.mulf %420, %419 : vector<16x16xf32>
    %422 = arith.addf %418, %421 : vector<16x16xf32>
    %423 = vector.extract_strided_slice %145 {offsets = [4, 0], sizes = [16, 16], strides = [1, 1]} : vector<22x16xf32> to vector<16x16xf32>
    %424 = vector.broadcast %117 : f32 to vector<16x16xf32>
    %425 = arith.mulf %424, %423 : vector<16x16xf32>
    %426 = arith.addf %422, %425 : vector<16x16xf32>
    %427 = vector.extract_strided_slice %132 {offsets = [5, 0], sizes = [16, 16], strides = [1, 1]} : vector<22x16xf32> to vector<16x16xf32>
    %428 = vector.broadcast %69 : f32 to vector<16x16xf32>
    %429 = arith.mulf %428, %427 : vector<16x16xf32>
    %430 = arith.addf %426, %429 : vector<16x16xf32>
    %431 = vector.extract_strided_slice %139 {offsets = [5, 0], sizes = [16, 16], strides = [1, 1]} : vector<22x16xf32> to vector<16x16xf32>
    %432 = vector.broadcast %118 : f32 to vector<16x16xf32>
    %433 = arith.mulf %432, %431 : vector<16x16xf32>
    %434 = arith.addf %430, %433 : vector<16x16xf32>
    %435 = vector.extract_strided_slice %133 {offsets = [5, 0], sizes = [16, 16], strides = [1, 1]} : vector<22x16xf32> to vector<16x16xf32>
    %436 = vector.broadcast %70 : f32 to vector<16x16xf32>
    %437 = arith.mulf %436, %435 : vector<16x16xf32>
    %438 = arith.addf %434, %437 : vector<16x16xf32>
    %439 = vector.extract_strided_slice %140 {offsets = [5, 0], sizes = [16, 16], strides = [1, 1]} : vector<22x16xf32> to vector<16x16xf32>
    %440 = vector.broadcast %119 : f32 to vector<16x16xf32>
    %441 = arith.mulf %440, %439 : vector<16x16xf32>
    %442 = arith.addf %438, %441 : vector<16x16xf32>
    %443 = vector.extract_strided_slice %134 {offsets = [5, 0], sizes = [16, 16], strides = [1, 1]} : vector<22x16xf32> to vector<16x16xf32>
    %444 = vector.broadcast %71 : f32 to vector<16x16xf32>
    %445 = arith.mulf %444, %443 : vector<16x16xf32>
    %446 = arith.addf %442, %445 : vector<16x16xf32>
    %447 = vector.extract_strided_slice %141 {offsets = [5, 0], sizes = [16, 16], strides = [1, 1]} : vector<22x16xf32> to vector<16x16xf32>
    %448 = vector.broadcast %120 : f32 to vector<16x16xf32>
    %449 = arith.mulf %448, %447 : vector<16x16xf32>
    %450 = arith.addf %446, %449 : vector<16x16xf32>
    %451 = vector.extract_strided_slice %135 {offsets = [5, 0], sizes = [16, 16], strides = [1, 1]} : vector<22x16xf32> to vector<16x16xf32>
    %452 = vector.broadcast %72 : f32 to vector<16x16xf32>
    %453 = arith.mulf %452, %451 : vector<16x16xf32>
    %454 = arith.addf %450, %453 : vector<16x16xf32>
    %455 = vector.extract_strided_slice %142 {offsets = [5, 0], sizes = [16, 16], strides = [1, 1]} : vector<22x16xf32> to vector<16x16xf32>
    %456 = vector.broadcast %121 : f32 to vector<16x16xf32>
    %457 = arith.mulf %456, %455 : vector<16x16xf32>
    %458 = arith.addf %454, %457 : vector<16x16xf32>
    %459 = vector.extract_strided_slice %136 {offsets = [5, 0], sizes = [16, 16], strides = [1, 1]} : vector<22x16xf32> to vector<16x16xf32>
    %460 = vector.broadcast %73 : f32 to vector<16x16xf32>
    %461 = arith.mulf %460, %459 : vector<16x16xf32>
    %462 = arith.addf %458, %461 : vector<16x16xf32>
    %463 = vector.extract_strided_slice %143 {offsets = [5, 0], sizes = [16, 16], strides = [1, 1]} : vector<22x16xf32> to vector<16x16xf32>
    %464 = vector.broadcast %122 : f32 to vector<16x16xf32>
    %465 = arith.mulf %464, %463 : vector<16x16xf32>
    %466 = arith.addf %462, %465 : vector<16x16xf32>
    %467 = vector.extract_strided_slice %137 {offsets = [5, 0], sizes = [16, 16], strides = [1, 1]} : vector<22x16xf32> to vector<16x16xf32>
    %468 = vector.broadcast %74 : f32 to vector<16x16xf32>
    %469 = arith.mulf %468, %467 : vector<16x16xf32>
    %470 = arith.addf %466, %469 : vector<16x16xf32>
    %471 = vector.extract_strided_slice %144 {offsets = [5, 0], sizes = [16, 16], strides = [1, 1]} : vector<22x16xf32> to vector<16x16xf32>
    %472 = vector.broadcast %123 : f32 to vector<16x16xf32>
    %473 = arith.mulf %472, %471 : vector<16x16xf32>
    %474 = arith.addf %470, %473 : vector<16x16xf32>
    %475 = vector.extract_strided_slice %138 {offsets = [5, 0], sizes = [16, 16], strides = [1, 1]} : vector<22x16xf32> to vector<16x16xf32>
    %476 = vector.broadcast %75 : f32 to vector<16x16xf32>
    %477 = arith.mulf %476, %475 : vector<16x16xf32>
    %478 = arith.addf %474, %477 : vector<16x16xf32>
    %479 = vector.extract_strided_slice %145 {offsets = [5, 0], sizes = [16, 16], strides = [1, 1]} : vector<22x16xf32> to vector<16x16xf32>
    %480 = vector.broadcast %124 : f32 to vector<16x16xf32>
    %481 = arith.mulf %480, %479 : vector<16x16xf32>
    %482 = arith.addf %478, %481 : vector<16x16xf32>
    %483 = vector.extract_strided_slice %132 {offsets = [6, 0], sizes = [16, 16], strides = [1, 1]} : vector<22x16xf32> to vector<16x16xf32>
    %484 = vector.broadcast %76 : f32 to vector<16x16xf32>
    %485 = arith.mulf %484, %483 : vector<16x16xf32>
    %486 = arith.addf %482, %485 : vector<16x16xf32>
    %487 = vector.extract_strided_slice %139 {offsets = [6, 0], sizes = [16, 16], strides = [1, 1]} : vector<22x16xf32> to vector<16x16xf32>
    %488 = vector.broadcast %125 : f32 to vector<16x16xf32>
    %489 = arith.mulf %488, %487 : vector<16x16xf32>
    %490 = arith.addf %486, %489 : vector<16x16xf32>
    %491 = vector.extract_strided_slice %133 {offsets = [6, 0], sizes = [16, 16], strides = [1, 1]} : vector<22x16xf32> to vector<16x16xf32>
    %492 = vector.broadcast %77 : f32 to vector<16x16xf32>
    %493 = arith.mulf %492, %491 : vector<16x16xf32>
    %494 = arith.addf %490, %493 : vector<16x16xf32>
    %495 = vector.extract_strided_slice %140 {offsets = [6, 0], sizes = [16, 16], strides = [1, 1]} : vector<22x16xf32> to vector<16x16xf32>
    %496 = vector.broadcast %126 : f32 to vector<16x16xf32>
    %497 = arith.mulf %496, %495 : vector<16x16xf32>
    %498 = arith.addf %494, %497 : vector<16x16xf32>
    %499 = vector.extract_strided_slice %134 {offsets = [6, 0], sizes = [16, 16], strides = [1, 1]} : vector<22x16xf32> to vector<16x16xf32>
    %500 = vector.broadcast %78 : f32 to vector<16x16xf32>
    %501 = arith.mulf %500, %499 : vector<16x16xf32>
    %502 = arith.addf %498, %501 : vector<16x16xf32>
    %503 = vector.extract_strided_slice %141 {offsets = [6, 0], sizes = [16, 16], strides = [1, 1]} : vector<22x16xf32> to vector<16x16xf32>
    %504 = vector.broadcast %127 : f32 to vector<16x16xf32>
    %505 = arith.mulf %504, %503 : vector<16x16xf32>
    %506 = arith.addf %502, %505 : vector<16x16xf32>
    %507 = vector.extract_strided_slice %135 {offsets = [6, 0], sizes = [16, 16], strides = [1, 1]} : vector<22x16xf32> to vector<16x16xf32>
    %508 = vector.broadcast %79 : f32 to vector<16x16xf32>
    %509 = arith.mulf %508, %507 : vector<16x16xf32>
    %510 = arith.addf %506, %509 : vector<16x16xf32>
    %511 = vector.extract_strided_slice %142 {offsets = [6, 0], sizes = [16, 16], strides = [1, 1]} : vector<22x16xf32> to vector<16x16xf32>
    %512 = vector.broadcast %128 : f32 to vector<16x16xf32>
    %513 = arith.mulf %512, %511 : vector<16x16xf32>
    %514 = arith.addf %510, %513 : vector<16x16xf32>
    %515 = vector.extract_strided_slice %136 {offsets = [6, 0], sizes = [16, 16], strides = [1, 1]} : vector<22x16xf32> to vector<16x16xf32>
    %516 = vector.broadcast %80 : f32 to vector<16x16xf32>
    %517 = arith.mulf %516, %515 : vector<16x16xf32>
    %518 = arith.addf %514, %517 : vector<16x16xf32>
    %519 = vector.extract_strided_slice %143 {offsets = [6, 0], sizes = [16, 16], strides = [1, 1]} : vector<22x16xf32> to vector<16x16xf32>
    %520 = vector.broadcast %129 : f32 to vector<16x16xf32>
    %521 = arith.mulf %520, %519 : vector<16x16xf32>
    %522 = arith.addf %518, %521 : vector<16x16xf32>
    %523 = vector.extract_strided_slice %137 {offsets = [6, 0], sizes = [16, 16], strides = [1, 1]} : vector<22x16xf32> to vector<16x16xf32>
    %524 = vector.broadcast %81 : f32 to vector<16x16xf32>
    %525 = arith.mulf %524, %523 : vector<16x16xf32>
    %526 = arith.addf %522, %525 : vector<16x16xf32>
    %527 = vector.extract_strided_slice %144 {offsets = [6, 0], sizes = [16, 16], strides = [1, 1]} : vector<22x16xf32> to vector<16x16xf32>
    %528 = vector.broadcast %130 : f32 to vector<16x16xf32>
    %529 = arith.mulf %528, %527 : vector<16x16xf32>
    %530 = arith.addf %526, %529 : vector<16x16xf32>
    %531 = vector.extract_strided_slice %138 {offsets = [6, 0], sizes = [16, 16], strides = [1, 1]} : vector<22x16xf32> to vector<16x16xf32>
    %532 = vector.broadcast %82 : f32 to vector<16x16xf32>
    %533 = arith.mulf %532, %531 : vector<16x16xf32>
    %534 = arith.addf %530, %533 : vector<16x16xf32>
    %535 = vector.extract_strided_slice %145 {offsets = [6, 0], sizes = [16, 16], strides = [1, 1]} : vector<22x16xf32> to vector<16x16xf32>
    %536 = vector.broadcast %131 : f32 to vector<16x16xf32>
    %537 = arith.mulf %536, %535 : vector<16x16xf32>
    %538 = arith.addf %534, %537 : vector<16x16xf32>
    %539 = arith.negf %538 : vector<16x16xf32>
    %540 = math.exp %539 : vector<16x16xf32>
    %cst_71 = arith.constant 1.000000e+00 : f32
    %541 = vector.broadcast %cst_71 : f32 to vector<16x16xf32>
    %542 = arith.addf %541, %540 : vector<16x16xf32>
    %543 = arith.divf %541, %542 : vector<16x16xf32>
    %c0_72 = arith.constant 0 : index
    %c0_73 = arith.constant 0 : index
    %544 = vector.load %arg6[%c0_72, %c0_73] : memref<16x16xf32, #tpu.memory_space<vmem>>, vector<16x16xf32>
    tpu.vector_store %arg6[%c0_72, %c0_73], %543 {strides = array<i32>} : memref<16x16xf32, #tpu.memory_space<vmem>>, vector<16x16xf32>,
    %c0_74 = arith.constant 0 : index
    %c0_75 = arith.constant 0 : index
    %545 = vector.load %arg6[%c0_74, %c0_75] : memref<16x16xf32, #tpu.memory_space<vmem>>, vector<16x16xf32>
    %c0_76 = arith.constant 0 : index
    %c0_77 = arith.constant 0 : index
    %c0_78 = arith.constant 0 : index
    %c0_79 = arith.constant 0 : index
    %546 = vector.load %arg2[%c0_76, %c0_77, %c0_78, %c0_79] : memref<1x4x16x16xf32, #tpu.memory_space<vmem>>, vector<1x1x16x16xf32>
    %547 = vector.shape_cast %546 : vector<1x1x16x16xf32> to vector<16x16xf32>
    %548 = arith.mulf %547, %545 : vector<16x16xf32>
    %c0_80 = arith.constant 0 : index
    %c0_81 = arith.constant 0 : index
    %c0_82 = arith.constant 0 : index
    %c0_83 = arith.constant 0 : index
    %549 = vector.load %arg3[%c0_80, %c0_81, %c0_82, %c0_83] : memref<1x4x16x16xf32, #tpu.memory_space<vmem>>, vector<1x1x16x16xf32>
    %550 = vector.shape_cast %549 : vector<1x1x16x16xf32> to vector<16x16xf32>
    %551 = vector.shape_cast %548 : vector<16x16xf32> to vector<1x1x16x16xf32>
    tpu.vector_store %arg3[%c0_80, %c0_81, %c0_82, %c0_83], %551 {strides = array<i32>} : memref<1x4x16x16xf32, #tpu.memory_space<vmem>>, vector<1x1x16x16xf32>,
    %c0_84 = arith.constant 0 : index
    %c1_85 = arith.constant 1 : index
    %c0_86 = arith.constant 0 : index
    %c0_87 = arith.constant 0 : index
    %552 = vector.load %arg2[%c0_84, %c1_85, %c0_86, %c0_87] : memref<1x4x16x16xf32, #tpu.memory_space<vmem>>, vector<1x1x16x16xf32>
    %553 = vector.shape_cast %552 : vector<1x1x16x16xf32> to vector<16x16xf32>
    %554 = arith.mulf %553, %545 : vector<16x16xf32>
    %c0_88 = arith.constant 0 : index
    %c1_89 = arith.constant 1 : index
    %c0_90 = arith.constant 0 : index
    %c0_91 = arith.constant 0 : index
    %555 = vector.load %arg3[%c0_88, %c1_89, %c0_90, %c0_91] : memref<1x4x16x16xf32, #tpu.memory_space<vmem>>, vector<1x1x16x16xf32>
    %556 = vector.shape_cast %555 : vector<1x1x16x16xf32> to vector<16x16xf32>
    %557 = vector.shape_cast %554 : vector<16x16xf32> to vector<1x1x16x16xf32>
    tpu.vector_store %arg3[%c0_88, %c1_89, %c0_90, %c0_91], %557 {strides = array<i32>} : memref<1x4x16x16xf32, #tpu.memory_space<vmem>>, vector<1x1x16x16xf32>,
    %c0_92 = arith.constant 0 : index
    %c2_93 = arith.constant 2 : index
    %c0_94 = arith.constant 0 : index
    %c0_95 = arith.constant 0 : index
    %558 = vector.load %arg2[%c0_92, %c2_93, %c0_94, %c0_95] : memref<1x4x16x16xf32, #tpu.memory_space<vmem>>, vector<1x1x16x16xf32>
    %559 = vector.shape_cast %558 : vector<1x1x16x16xf32> to vector<16x16xf32>
    %560 = arith.mulf %559, %545 : vector<16x16xf32>
    %c0_96 = arith.constant 0 : index
    %c2_97 = arith.constant 2 : index
    %c0_98 = arith.constant 0 : index
    %c0_99 = arith.constant 0 : index
    %561 = vector.load %arg3[%c0_96, %c2_97, %c0_98, %c0_99] : memref<1x4x16x16xf32, #tpu.memory_space<vmem>>, vector<1x1x16x16xf32>
    %562 = vector.shape_cast %561 : vector<1x1x16x16xf32> to vector<16x16xf32>
    %563 = vector.shape_cast %560 : vector<16x16xf32> to vector<1x1x16x16xf32>
    tpu.vector_store %arg3[%c0_96, %c2_97, %c0_98, %c0_99], %563 {strides = array<i32>} : memref<1x4x16x16xf32, #tpu.memory_space<vmem>>, vector<1x1x16x16xf32>,
    %c0_100 = arith.constant 0 : index
    %c3_101 = arith.constant 3 : index
    %c0_102 = arith.constant 0 : index
    %c0_103 = arith.constant 0 : index
    %564 = vector.load %arg2[%c0_100, %c3_101, %c0_102, %c0_103] : memref<1x4x16x16xf32, #tpu.memory_space<vmem>>, vector<1x1x16x16xf32>
    %565 = vector.shape_cast %564 : vector<1x1x16x16xf32> to vector<16x16xf32>
    %566 = arith.mulf %565, %545 : vector<16x16xf32>
    %c0_104 = arith.constant 0 : index
    %c3_105 = arith.constant 3 : index
    %c0_106 = arith.constant 0 : index
    %c0_107 = arith.constant 0 : index
    %567 = vector.load %arg3[%c0_104, %c3_105, %c0_106, %c0_107] : memref<1x4x16x16xf32, #tpu.memory_space<vmem>>, vector<1x1x16x16xf32>
    %568 = vector.shape_cast %567 : vector<1x1x16x16xf32> to vector<16x16xf32>
    %569 = vector.shape_cast %566 : vector<16x16xf32> to vector<1x1x16x16xf32>
    tpu.vector_store %arg3[%c0_104, %c3_105, %c0_106, %c0_107], %569 {strides = array<i32>} : memref<1x4x16x16xf32, #tpu.memory_space<vmem>>, vector<1x1x16x16xf32>,
    return
  }
  func.func @transform_0(%arg0: i32) -> i32 {
    %c0_i32 = arith.constant 0 : i32
    %c0_i32_0 = arith.constant 0 : i32
    return %c0_i32 : i32
  }
  func.func @transform_1(%arg0: i32) -> (i32, i32, i32, i32) {
    %c0_i32 = arith.constant 0 : i32
    %c0_i32_0 = arith.constant 0 : i32
    %c0_i32_1 = arith.constant 0 : i32
    %c0_i32_2 = arith.constant 0 : i32
    return %arg0, %c0_i32, %c0_i32_0, %c0_i32_1 : i32, i32, i32, i32
  }
  func.func @transform_2(%arg0: i32) -> (i32, i32, i32, i32) {
    %c0_i32 = arith.constant 0 : i32
    %c0_i32_0 = arith.constant 0 : i32
    %c0_i32_1 = arith.constant 0 : i32
    %c0_i32_2 = arith.constant 0 : i32
    return %arg0, %c0_i32, %c0_i32_0, %c0_i32_1 : i32, i32, i32, i32
  }
}

</mosaic_0001>

<llo_original>
// kernel: tpu_custom_call.1
$region0: #{tpu_custom_call.1}
  #allocation0 [shape = 'u32[]', space=smem, size = 0x4, offset = 0x4, fixed_abs, tag = 'smem constant byte address 0x4 - core index']
  #allocation1 [shape = 'u32[72,128]{1,0:T(1,128)}', space=vmem, size = 0x9000, scoped, tag = 'internal scratch']
  #allocation2 [shape = 'f32[22,22]{1,0:T(8,128)}', space=vmem, size = 0x3000, scoped, tag = 'scratch operand']
  #allocation3 [shape = 'f32[22,22]{1,0:T(8,128)}', space=vmem, size = 0x3000, scoped, tag = 'scratch operand']
  #allocation4 [shape = 'f32[16,16]{1,0:T(8,128)}', space=vmem, size = 0x2000, scoped, tag = 'scratch operand']
  %s0 = inlined_call_operand.hbm [shape: f32[98], index: 0, kind: input, shape index: {}]
  %s1 = inlined_call_operand.hbm [shape: f32[2,4,16,16], index: 1, kind: input, shape index: {}]
  %s2 = inlined_call_operand.hbm [shape: f32[2,4,16,16], index: 2, kind: output, shape index: {}]
  %s3 = sld [smem:[#allocation0]]
  $region49: #{tpu_custom_call.1} parent=0
    _
  %s5 = ssub.s32 1, %s3
  %s6 = scalar_select 0, %s5, %s3
  $region1: #{tpu_custom_call.1} parent=0
    #allocation5 [shape = 'u8[512]{0}', space=smem, size = 0x200, scoped, tag = 'input window, operand 0, single buffered']
    #allocation6 [shape = 's32[2]{0}', space=sflag, size = 0x8, scoped, tag = 'scoped memory for tpu_custom_call.1']
    #allocation7 [shape = 's32[2]{0}', space=sflag, size = 0x8, scoped, tag = 'scoped memory for tpu_custom_call.1']
    #allocation8 [shape = 's32[2]{0}', space=sflag, size = 0x8, scoped, tag = 'scoped memory for tpu_custom_call.1']
    #allocation9 [shape = 'u8[65536]{0}', space=vmem, size = 0x10000, scoped, tag = 'input window, operand 1']
    #allocation10 [shape = 'u8[65536]{0}', space=vmem, size = 0x10000, scoped, tag = 'output window, operand 0']
    %7 = vsyncpa [#allocation8], 0
    %8 = vsyncpa [#allocation6], 0
    %s9 = scalar_lea.sflag [#allocation6], 1
    %10 = vsyncpa %s9, 0
    %11 = vsyncpa [#allocation7], 0
    %s12 = scalar_lea.sflag [#allocation7], 1
    %13 = vsyncpa %s12, 0
    loop: start=0, step=1, limit=4
    $region2: #{tpu_custom_call.1} parent=1 // loop_pre_header
      _
    $region3: #{tpu_custom_call.1} parent=1 // loop_header
      %s15 = sphi 0, %s19
      %p16 = scmp.ge.s32.totalorder %s15, 4
      %s23 = sphi 0, %s23
      %s25 = sphi 0, %s23
      %s26 = sphi 0, %s25
      %s40 = sphi 0, %s26
      %s46 = sphi 0, %s48
      %s49 = sphi 0, %s46
      %s50 = sphi 0, %s49
      %s66 = sphi 0, %s50
      %s72 = sphi 0, %s74
      %s75 = sphi 0, %s72
      %s76 = sphi 0, %s75
      %s92 = sphi 0, %s76
    $region4: #{tpu_custom_call.1} parent=1 // loop_header_branch
      %18 = sbr.rel (%p16) target = $region8
    $region5: #{tpu_custom_call.1} parent=1 // loop_body
      %s20 = ssub.s32 %s15, 1
      %s21 = ssub.s32 %s15, 2
      %s22 = sadd.s32 %s15, 1
      %s24 = sadd.s32 %s23, 1
      %p27 = scmp.eq.s32.totalorder %s15, 1
      %p28 = scmp.ne.s32.totalorder %s23, %s25
      %p29 = scmp.eq.s32.totalorder %s15, 0
      %p30 = por %p28, %p29
      %p31 = scmp.ne.s32.totalorder %s23, %s25
      %p32 = scmp.eq.s32.totalorder %s20, 1
      %p33 = por %p31, %p32
      %p34 = scmp.ne.s32.totalorder %s25, %s26
      %p35 = scmp.eq.s32.totalorder %s20, 0
      %p36 = por %p34, %p35
      %p37 = scmp.ne.s32.totalorder %s25, %s26
      %p38 = scmp.eq.s32.totalorder %s21, 1
      %p39 = por %p37, %p38
      %p41 = scmp.ne.s32.totalorder %s26, %s40
      %p42 = scmp.eq.s32.totalorder %s21, 0
      %p43 = por %p41, %p42
      %s44 = ssub.s32 %s15, %s22
      %p45 = scmp.eq.s32.totalorder %s44, 0
      %s47 = sadd.s32 %s46, 1
      %s48 = scalar_select %p45, %s46, %s47
      %p51 = pneg %p45
      %p52 = scmp.eq.s32.totalorder %s15, 1
      %p53 = por %p51, %p52
      %p54 = scmp.ne.s32.totalorder %s46, %s49
      %p55 = scmp.eq.s32.totalorder %s15, 0
      %p56 = por %p54, %p55
      %p57 = scmp.ne.s32.totalorder %s46, %s49
      %p58 = scmp.eq.s32.totalorder %s20, 1
      %p59 = por %p57, %p58
      %p60 = scmp.ne.s32.totalorder %s49, %s50
      %p61 = scmp.eq.s32.totalorder %s20, 0
      %p62 = por %p60, %p61
      %p63 = scmp.ne.s32.totalorder %s49, %s50
      %p64 = scmp.eq.s32.totalorder %s21, 1
      %p65 = por %p63, %p64
      %p67 = scmp.ne.s32.totalorder %s50, %s66
      %p68 = scmp.eq.s32.totalorder %s21, 0
      %p69 = por %p67, %p68
      %s70 = ssub.s32 %s15, %s22
      %p71 = scmp.eq.s32.totalorder %s70, 0
      %s73 = sadd.s32 %s72, 1
      %s74 = scalar_select %p71, %s72, %s73
      %p77 = pneg %p71
      %p78 = scmp.eq.s32.totalorder %s15, 1
      %p79 = por %p77, %p78
      %p80 = scmp.ne.s32.totalorder %s72, %s75
      %p81 = scmp.eq.s32.totalorder %s15, 0
      %p82 = por %p80, %p81
      %p83 = scmp.ne.s32.totalorder %s72, %s75
      %p84 = scmp.eq.s32.totalorder %s20, 1
      %p85 = por %p83, %p84
      %p86 = scmp.ne.s32.totalorder %s75, %s76
      %p87 = scmp.eq.s32.totalorder %s20, 0
      %p88 = por %p86, %p87
      %p89 = scmp.ne.s32.totalorder %s75, %s76
      %p90 = scmp.eq.s32.totalorder %s21, 1
      %p91 = por %p89, %p90
      %p93 = scmp.ne.s32.totalorder %s76, %s92
      %p94 = scmp.eq.s32.totalorder %s21, 0
      %p95 = por %p93, %p94
      %p96 = scmp.le.s32.totalorder 1, %s15
      %p97 = scmp.lt.s32.totalorder %s15, 3
      %p98 = pnand %p96, %p97
      %p99 = pneg %p98
      // Predicated region
      $region9: #{tpu_custom_call.1} parent=5 // pred_check
        _
      $region10: #{tpu_custom_call.1} parent=5 // pred_check_branch
        %101 = sbr.rel (%p98) target = $region12
      $region11: #{tpu_custom_call.1} parent=5 // pred_region
        %s102 = ssub.s32 %s15, 1
        // Predicated region
        $region13: #{tpu_custom_call.1} parent=11 // pred_check
          %p103 = pneg %p36
        $region14: #{tpu_custom_call.1} parent=11 // pred_check_branch
          %105 = sbr.rel (%p103) target = $region16
        $region15: #{tpu_custom_call.1} parent=11 // pred_region
          %107 = vsyncadd [#allocation8], 0
          %s109 = sshll.u32 %s0, 4
          %s110 = int_to_ptr.hbm [resolvable:$true] %s109
          %112 = dma.hbm_to_smem %s110, 16, [#allocation5], [#allocation8]
        $region16: #{tpu_custom_call.1} parent=11 // pred_fallthru
          _
      $region12: #{tpu_custom_call.1} parent=5 // pred_fallthru
        _
      %p113 = scmp.lt.s32.totalorder %s15, 2
      // Predicated region
      $region17: #{tpu_custom_call.1} parent=5 // pred_check
        %p114 = pneg %p113
      $region18: #{tpu_custom_call.1} parent=5 // pred_check_branch
        %116 = sbr.rel (%p114) target = $region20
      $region19: #{tpu_custom_call.1} parent=5 // pred_region
        // Predicated region
        $region21: #{tpu_custom_call.1} parent=19 // pred_check
          %p117 = pneg %p56
        $region22: #{tpu_custom_call.1} parent=19 // pred_check_branch
          %119 = sbr.rel (%p117) target = $region24
        $region23: #{tpu_custom_call.1} parent=19 // pred_region
          %s120 = sand.u32 %s46, 1
          %s121 = scalar_lea.sflag [#allocation6], %s120
          %s122 = sand.u32 %s46, 1
          %s123 = smul.addr %s122, 64
          %s124 = scalar_lea.vmem [#allocation9], %s123
          %126 = vsyncadd %s121, 0
          %s127 = smul.addr %s15, 8
          %s128 = smul.addr %s127, 8
          %s129 = scalar_lea.hbm %s1, %s128
          %s130 = sshll.u32 %s129, 4
          %s131 = int_to_ptr.hbm [resolvable:$true] %s130
          %s132 = sshll.u32 %s124, 4
          %s133 = int_to_ptr.vmem [resolvable:$true] %s132
          %138 = dma.hbm_to_vmem [thread:$0]  %s131, 1024, %s133, %s121, 128, 128, 8
        $region24: #{tpu_custom_call.1} parent=19 // pred_fallthru
          _
      $region20: #{tpu_custom_call.1} parent=5 // pred_fallthru
        _
      %p139 = scmp.le.s32.totalorder 1, %s15
      %p140 = scmp.lt.s32.totalorder %s15, 3
      %p141 = pnand %p139, %p140
      %p142 = pneg %p141
      // Predicated region
      $region25: #{tpu_custom_call.1} parent=5 // pred_check
        _
      $region26: #{tpu_custom_call.1} parent=5 // pred_check_branch
        %144 = sbr.rel (%p141) target = $region28
      $region27: #{tpu_custom_call.1} parent=5 // pred_region
        %s145 = ssub.s32 %s15, 1
        // Predicated region
        $region29: #{tpu_custom_call.1} parent=27 // pred_check
          %p146 = pneg %p36
        $region30: #{tpu_custom_call.1} parent=27 // pred_check_branch
          %148 = sbr.rel (%p146) target = $region32
        $region31: #{tpu_custom_call.1} parent=27 // pred_region
          %150 = dma.done [#allocation8], 16
        $region32: #{tpu_custom_call.1} parent=27 // pred_fallthru
          _
        %s151 = sand.u32 %s49, 1
        %s152 = scalar_lea.sflag [#allocation6], %s151
        %s153 = sand.u32 %s49, 1
        %s154 = smul.addr %s153, 64
        %s155 = scalar_lea.vmem [#allocation9], %s154
        // Predicated region
        $region33: #{tpu_custom_call.1} parent=27 // pred_check
          %p156 = pneg %p62
        $region34: #{tpu_custom_call.1} parent=27 // pred_check_branch
          %158 = sbr.rel (%p156) target = $region36
        $region35: #{tpu_custom_call.1} parent=27 // pred_region
          %160 = dma.done %s152, 1024
        $region36: #{tpu_custom_call.1} parent=27 // pred_fallthru
          _
        %161 = sfence
        %p162 = pneg %p36
        %p163 = pneg %p33
        %s164 = sand.u32 %s49, 1
        %s165 = scalar_lea.sflag [#allocation6], %s164
        %s166 = sand.u32 %s49, 1
        %s167 = smul.addr %s166, 64
        %s168 = scalar_lea.vmem [#allocation9], %s167
        %p169 = pneg %p62
        %p170 = pneg %p59
        %p171 = pneg %p88
        %p172 = pneg %p85
        %s173 = sand.u32 %s75, 1
        %s174 = scalar_lea.sflag [#allocation7], %s173
        %s175 = sand.u32 %s75, 1
        %s176 = smul.addr %s175, 64
        %s177 = scalar_lea.vmem [#allocation10], %s176
        %v178 = vld [vmem:[%s155] sm:$0xff]
        %v179 = vld [vmem:[%s155 + $0x8] sm:$0xff]
        %v180 = vadd.f32 %v178, 0.0
        %v181 = vadd.f32 %v179, 0.0
        %s182 = scalar_lea.vmem %s155, 16 [#allocation9]
        %v183 = vld [vmem:[%s182] sm:$0xff]
        %v184 = vld [vmem:[%s182 + $0x8] sm:$0xff]
        %v185 = vadd.f32 %v180, %v183
        %v186 = vadd.f32 %v181, %v184
        %v187 = vmax.f32 %v178, %v183
        %v188 = vmax.f32 %v179, %v184
        %s189 = scalar_lea.vmem %s155, 32 [#allocation9]
        %v190 = vld [vmem:[%s189] sm:$0xff]
        %v191 = vld [vmem:[%s189 + $0x8] sm:$0xff]
        %v192 = vadd.f32 %v185, %v190
        %v193 = vadd.f32 %v186, %v191
        %v194 = vmax.f32 %v187, %v190
        %v195 = vmax.f32 %v188, %v191
        %s196 = scalar_lea.vmem %s155, 48 [#allocation9]
        %v197 = vld [vmem:[%s196] sm:$0xff]
        %v198 = vld [vmem:[%s196 + $0x8] sm:$0xff]
        %v199 = vadd.f32 %v192, %v197
        %v200 = vadd.f32 %v193, %v198
        %v201 = vmax.f32 %v194, %v197
        %v202 = vmax.f32 %v195, %v198
        %v203 = vmul.f32 %v199, 0.25
        %v204 = vmul.f32 %v200, 0.25
        %vm205 = vcmask 174080
        %206 = vst.msk [vmem:[#allocation2] sm:$0x7] %vm205, 0.0
        %207 = vst.msk [vmem:[#allocation2 + $0x13] sm:$0x7] %vm205, 0.0
        %vm208 = vcmask 23552
        %209 = vst.msk [vmem:[#allocation2 + $0x3] sm:$0xff] %vm208, 0.0
        %210 = vst.msk [vmem:[#allocation2 + $0xb] sm:$0xff] %vm208, 0.0
        %vm211 = vcmask 179352
        %212 = vst.msk [vmem:[#allocation2 + $0x3] sm:$0xff] %vm211, 0.0
        %213 = vst.msk [vmem:[#allocation2 + $0xb] sm:$0xff] %vm211, 0.0
        %216 = vrot.lane.b32.xlu0 %v203, 3
        %v217 = vpop.permute.xlu0 %216
        %218 = vrot.lane.b32.xlu0 %v204, 3
        %v219 = vpop.permute.xlu0 %218
        %vm222 = vcmask 154648
        %223 = vst.msk [vmem:[#allocation2 + $0x3] sm:$0xff] %vm222, %v217
        %224 = vst.msk [vmem:[#allocation2 + $0xb] sm:$0xff] %vm222, %v219
        %225 = vst.msk [vmem:[#allocation3] sm:$0x7] %vm205, 0.0
        %226 = vst.msk [vmem:[#allocation3 + $0x13] sm:$0x7] %vm205, 0.0
        %227 = vst.msk [vmem:[#allocation3 + $0x3] sm:$0xff] %vm208, 0.0
        %228 = vst.msk [vmem:[#allocation3 + $0xb] sm:$0xff] %vm208, 0.0
        %229 = vst.msk [vmem:[#allocation3 + $0x3] sm:$0xff] %vm211, 0.0
        %230 = vst.msk [vmem:[#allocation3 + $0xb] sm:$0xff] %vm211, 0.0
        %233 = vrot.lane.b32.xlu0 %v201, 3
        %v234 = vpop.permute.xlu0 %233
        %235 = vrot.lane.b32.xlu0 %v202, 3
        %v236 = vpop.permute.xlu0 %235
        %239 = vst.msk [vmem:[#allocation3 + $0x3] sm:$0xff] %vm222, %v234
        %240 = vst.msk [vmem:[#allocation3 + $0xb] sm:$0xff] %vm222, %v236
        %s241 = sld [smem:[#allocation5]]
        %s242 = sld [smem:[#allocation5 + $0x1]]
        %s243 = sld [smem:[#allocation5 + $0x2]]
        %s244 = sld [smem:[#allocation5 + $0x3]]
        %s245 = sld [smem:[#allocation5 + $0x4]]
        %s246 = sld [smem:[#allocation5 + $0x5]]
        %s247 = sld [smem:[#allocation5 + $0x6]]
        %s248 = sld [smem:[#allocation5 + $0x7]]
        %s249 = sld [smem:[#allocation5 + $0x8]]
        %s250 = sld [smem:[#allocation5 + $0x9]]
        %s251 = sld [smem:[#allocation5 + $0xa]]
        %s252 = sld [smem:[#allocation5 + $0xb]]
        %s253 = sld [smem:[#allocation5 + $0xc]]
        %s254 = sld [smem:[#allocation5 + $0xd]]
        %s255 = sld [smem:[#allocation5 + $0xe]]
        %s256 = sld [smem:[#allocation5 + $0xf]]
        %s257 = sld [smem:[#allocation5 + $0x10]]
        %s258 = sld [smem:[#allocation5 + $0x11]]
        %s259 = sld [smem:[#allocation5 + $0x12]]
        %s260 = sld [smem:[#allocation5 + $0x13]]
        %s261 = sld [smem:[#allocation5 + $0x14]]
        %s262 = sld [smem:[#allocation5 + $0x15]]
        %s263 = sld [smem:[#allocation5 + $0x16]]
        %s264 = sld [smem:[#allocation5 + $0x17]]
        %s265 = sld [smem:[#allocation5 + $0x18]]
        %s266 = sld [smem:[#allocation5 + $0x19]]
        %s267 = sld [smem:[#allocation5 + $0x1a]]
        %s268 = sld [smem:[#allocation5 + $0x1b]]
        %s269 = sld [smem:[#allocation5 + $0x1c]]
        %s270 = sld [smem:[#allocation5 + $0x1d]]
        %s271 = sld [smem:[#allocation5 + $0x1e]]
        %s272 = sld [smem:[#allocation5 + $0x1f]]
        %s273 = sld [smem:[#allocation5 + $0x20]]
        %s274 = sld [smem:[#allocation5 + $0x21]]
        %s275 = sld [smem:[#allocation5 + $0x22]]
        %s276 = sld [smem:[#allocation5 + $0x23]]
        %s277 = sld [smem:[#allocation5 + $0x24]]
        %s278 = sld [smem:[#allocation5 + $0x25]]
        %s279 = sld [smem:[#allocation5 + $0x26]]
        %s280 = sld [smem:[#allocation5 + $0x27]]
        %s281 = sld [smem:[#allocation5 + $0x28]]
        %s282 = sld [smem:[#allocation5 + $0x29]]
        %s283 = sld [smem:[#allocation5 + $0x2a]]
        %s284 = sld [smem:[#allocation5 + $0x2b]]
        %s285 = sld [smem:[#allocation5 + $0x2c]]
        %s286 = sld [smem:[#allocation5 + $0x2d]]
        %s287 = sld [smem:[#allocation5 + $0x2e]]
        %s288 = sld [smem:[#allocation5 + $0x2f]]
        %s289 = sld [smem:[#allocation5 + $0x30]]
        %s290 = sld [smem:[#allocation5 + $0x31]]
        %s291 = sld [smem:[#allocation5 + $0x32]]
        %s292 = sld [smem:[#allocation5 + $0x33]]
        %s293 = sld [smem:[#allocation5 + $0x34]]
        %s294 = sld [smem:[#allocation5 + $0x35]]
        %s295 = sld [smem:[#allocation5 + $0x36]]
        %s296 = sld [smem:[#allocation5 + $0x37]]
        %s297 = sld [smem:[#allocation5 + $0x38]]
        %s298 = sld [smem:[#allocation5 + $0x39]]
        %s299 = sld [smem:[#allocation5 + $0x3a]]
        %s300 = sld [smem:[#allocation5 + $0x3b]]
        %s301 = sld [smem:[#allocation5 + $0x3c]]
        %s302 = sld [smem:[#allocation5 + $0x3d]]
        %s303 = sld [smem:[#allocation5 + $0x3e]]
        %s304 = sld [smem:[#allocation5 + $0x3f]]
        %s305 = sld [smem:[#allocation5 + $0x40]]
        %s306 = sld [smem:[#allocation5 + $0x41]]
        %s307 = sld [smem:[#allocation5 + $0x42]]
        %s308 = sld [smem:[#allocation5 + $0x43]]
        %s309 = sld [smem:[#allocation5 + $0x44]]
        %s310 = sld [smem:[#allocation5 + $0x45]]
        %s311 = sld [smem:[#allocation5 + $0x46]]
        %s312 = sld [smem:[#allocation5 + $0x47]]
        %s313 = sld [smem:[#allocation5 + $0x48]]
        %s314 = sld [smem:[#allocation5 + $0x49]]
        %s315 = sld [smem:[#allocation5 + $0x4a]]
        %s316 = sld [smem:[#allocation5 + $0x4b]]
        %s317 = sld [smem:[#allocation5 + $0x4c]]
        %s318 = sld [smem:[#allocation5 + $0x4d]]
        %s319 = sld [smem:[#allocation5 + $0x4e]]
        %s320 = sld [smem:[#allocation5 + $0x4f]]
        %s321 = sld [smem:[#allocation5 + $0x50]]
        %s322 = sld [smem:[#allocation5 + $0x51]]
        %s323 = sld [smem:[#allocation5 + $0x52]]
        %s324 = sld [smem:[#allocation5 + $0x53]]
        %s325 = sld [smem:[#allocation5 + $0x54]]
        %s326 = sld [smem:[#allocation5 + $0x55]]
        %s327 = sld [smem:[#allocation5 + $0x56]]
        %s328 = sld [smem:[#allocation5 + $0x57]]
        %s329 = sld [smem:[#allocation5 + $0x58]]
        %s330 = sld [smem:[#allocation5 + $0x59]]
        %s331 = sld [smem:[#allocation5 + $0x5a]]
        %s332 = sld [smem:[#allocation5 + $0x5b]]
        %s333 = sld [smem:[#allocation5 + $0x5c]]
        %s334 = sld [smem:[#allocation5 + $0x5d]]
        %s335 = sld [smem:[#allocation5 + $0x5e]]
        %s336 = sld [smem:[#allocation5 + $0x5f]]
        %s337 = sld [smem:[#allocation5 + $0x60]]
        %s338 = sld [smem:[#allocation5 + $0x61]]
        %v339 = vld [vmem:[#allocation2] sm:$0xff]
        %v340 = vld [vmem:[#allocation2 + $0x8] sm:$0xff]
        %v341 = vld [vmem:[#allocation2 + $0x10] sm:$0x3f]
        %v342 = vld [vmem:[#allocation3] sm:$0xff]
        %v343 = vld [vmem:[#allocation3 + $0x8] sm:$0xff]
        %v344 = vld [vmem:[#allocation3 + $0x10] sm:$0x3f]
        %v345 = vstv %s241
        %v346 = vmul.f32 %v345, %v339
        %v347 = vmul.f32 %v345, %v340
        %v348 = vadd.f32 %v346, 0.0
        %v349 = vadd.f32 %v347, 0.0
        %v350 = vstv %s290
        %v351 = vmul.f32 %v350, %v342
        %v352 = vmul.f32 %v350, %v343
        %v353 = vadd.f32 %v348, %v351
        %v354 = vadd.f32 %v349, %v352
        %v355 = vstv %s242
        %v356 = vmul.f32 %v355, %v339
        %v357 = vmul.f32 %v355, %v340
        %360 = vrot.lane.b32.xlu0 %v356, 127
        %v361 = vpop.permute.xlu0 %360
        %362 = vrot.lane.b32.xlu0 %v357, 127
        %v363 = vpop.permute.xlu0 %362
        %v366 = vadd.f32 %v353, %v361
        %v367 = vadd.f32 %v354, %v363
        %v368 = vstv %s291
        %v369 = vmul.f32 %v368, %v342
        %v370 = vmul.f32 %v368, %v343
        %373 = vrot.lane.b32.xlu0 %v369, 127
        %v374 = vpop.permute.xlu0 %373
        %375 = vrot.lane.b32.xlu0 %v370, 127
        %v376 = vpop.permute.xlu0 %375
        %v379 = vadd.f32 %v366, %v374
        %v380 = vadd.f32 %v367, %v376
        %v381 = vstv %s243
        %v382 = vmul.f32 %v381, %v339
        %v383 = vmul.f32 %v381, %v340
        %386 = vrot.lane.b32.xlu0 %v382, 126
        %v387 = vpop.permute.xlu0 %386
        %388 = vrot.lane.b32.xlu0 %v383, 126
        %v389 = vpop.permute.xlu0 %388
        %v392 = vadd.f32 %v379, %v387
        %v393 = vadd.f32 %v380, %v389
        %v394 = vstv %s292
        %v395 = vmul.f32 %v394, %v342
        %v396 = vmul.f32 %v394, %v343
        %399 = vrot.lane.b32.xlu0 %v395, 126
        %v400 = vpop.permute.xlu0 %399
        %401 = vrot.lane.b32.xlu0 %v396, 126
        %v402 = vpop.permute.xlu0 %401
        %v405 = vadd.f32 %v392, %v400
        %v406 = vadd.f32 %v393, %v402
        %v407 = vstv %s244
        %v408 = vmul.f32 %v407, %v339
        %v409 = vmul.f32 %v407, %v340
        %412 = vrot.lane.b32.xlu0 %v408, 125
        %v413 = vpop.permute.xlu0 %412
        %414 = vrot.lane.b32.xlu0 %v409, 125
        %v415 = vpop.permute.xlu0 %414
        %v418 = vadd.f32 %v405, %v413
        %v419 = vadd.f32 %v406, %v415
        %v420 = vstv %s293
        %v421 = vmul.f32 %v420, %v342
        %v422 = vmul.f32 %v420, %v343
        %425 = vrot.lane.b32.xlu0 %v421, 125
        %v426 = vpop.permute.xlu0 %425
        %427 = vrot.lane.b32.xlu0 %v422, 125
        %v428 = vpop.permute.xlu0 %427
        %v431 = vadd.f32 %v418, %v426
        %v432 = vadd.f32 %v419, %v428
        %v433 = vstv %s245
        %v434 = vmul.f32 %v433, %v339
        %v435 = vmul.f32 %v433, %v340
        %438 = vrot.lane.b32.xlu0 %v434, 124
        %v439 = vpop.permute.xlu0 %438
        %440 = vrot.lane.b32.xlu0 %v435, 124
        %v441 = vpop.permute.xlu0 %440
        %v444 = vadd.f32 %v431, %v439
        %v445 = vadd.f32 %v432, %v441
        %v446 = vstv %s294
        %v447 = vmul.f32 %v446, %v342
        %v448 = vmul.f32 %v446, %v343
        %451 = vrot.lane.b32.xlu0 %v447, 124
        %v452 = vpop.permute.xlu0 %451
        %453 = vrot.lane.b32.xlu0 %v448, 124
        %v454 = vpop.permute.xlu0 %453
        %v457 = vadd.f32 %v444, %v452
        %v458 = vadd.f32 %v445, %v454
        %v459 = vstv %s246
        %v460 = vmul.f32 %v459, %v339
        %v461 = vmul.f32 %v459, %v340
        %464 = vrot.lane.b32.xlu0 %v460, 123
        %v465 = vpop.permute.xlu0 %464
        %466 = vrot.lane.b32.xlu0 %v461, 123
        %v467 = vpop.permute.xlu0 %466
        %v470 = vadd.f32 %v457, %v465
        %v471 = vadd.f32 %v458, %v467
        %v472 = vstv %s295
        %v473 = vmul.f32 %v472, %v342
        %v474 = vmul.f32 %v472, %v343
        %477 = vrot.lane.b32.xlu0 %v473, 123
        %v478 = vpop.permute.xlu0 %477
        %479 = vrot.lane.b32.xlu0 %v474, 123
        %v480 = vpop.permute.xlu0 %479
        %v483 = vadd.f32 %v470, %v478
        %v484 = vadd.f32 %v471, %v480
        %v485 = vstv %s247
        %v486 = vmul.f32 %v485, %v339
        %v487 = vmul.f32 %v485, %v340
        %490 = vrot.lane.b32.xlu0 %v486, 122
        %v491 = vpop.permute.xlu0 %490
        %492 = vrot.lane.b32.xlu0 %v487, 122
        %v493 = vpop.permute.xlu0 %492
        %v496 = vadd.f32 %v483, %v491
        %v497 = vadd.f32 %v484, %v493
        %v498 = vstv %s296
        %v499 = vmul.f32 %v498, %v342
        %v500 = vmul.f32 %v498, %v343
        %503 = vrot.lane.b32.xlu0 %v499, 122
        %v504 = vpop.permute.xlu0 %503
        %505 = vrot.lane.b32.xlu0 %v500, 122
        %v506 = vpop.permute.xlu0 %505
        %v509 = vadd.f32 %v496, %v504
        %v510 = vadd.f32 %v497, %v506
        %v511 = vstv %s248
        %v512 = vmul.f32 %v511, %v339
        %v513 = vmul.f32 %v511, %v340
        %v514 = vmul.f32 %v511, %v341
        %vm518 = vcmask 1046528
        %v519 = vrot.slane %v512, 1
        %v520 = vrot.slane %v513, 1
        %v521 = vsel %vm518, %v519, %v520
        %v522 = vrot.slane %v514, 1
        %v523 = vsel %vm518, %v520, %v522
        %v526 = vadd.f32 %v509, %v521
        %v527 = vadd.f32 %v510, %v523
        %v528 = vstv %s297
        %v529 = vmul.f32 %v528, %v342
        %v530 = vmul.f32 %v528, %v343
        %v531 = vmul.f32 %v528, %v344
        %v535 = vrot.slane %v529, 1
        %v536 = vrot.slane %v530, 1
        %v537 = vsel %vm518, %v535, %v536
        %v538 = vrot.slane %v531, 1
        %v539 = vsel %vm518, %v536, %v538
        %v542 = vadd.f32 %v526, %v537
        %v543 = vadd.f32 %v527, %v539
        %v544 = vstv %s249
        %v545 = vmul.f32 %v544, %v339
        %v546 = vmul.f32 %v544, %v340
        %v547 = vmul.f32 %v544, %v341
        %v551 = vrot.slane %v545, 1
        %v552 = vrot.slane %v546, 1
        %v553 = vsel %vm518, %v551, %v552
        %v554 = vrot.slane %v547, 1
        %v555 = vsel %vm518, %v552, %v554
        %556 = vrot.lane.b32.xlu0 %v553, 127
        %v557 = vpop.permute.xlu0 %556
        %558 = vrot.lane.b32.xlu0 %v555, 127
        %v559 = vpop.permute.xlu0 %558
        %v562 = vadd.f32 %v542, %v557
        %v563 = vadd.f32 %v543, %v559
        %v564 = vstv %s298
        %v565 = vmul.f32 %v564, %v342
        %v566 = vmul.f32 %v564, %v343
        %v567 = vmul.f32 %v564, %v344
        %v571 = vrot.slane %v565, 1
        %v572 = vrot.slane %v566, 1
        %v573 = vsel %vm518, %v571, %v572
        %v574 = vrot.slane %v567, 1
        %v575 = vsel %vm518, %v572, %v574
        %576 = vrot.lane.b32.xlu0 %v573, 127
        %v577 = vpop.permute.xlu0 %576
        %578 = vrot.lane.b32.xlu0 %v575, 127
        %v579 = vpop.permute.xlu0 %578
        %v582 = vadd.f32 %v562, %v577
        %v583 = vadd.f32 %v563, %v579
        %v584 = vstv %s250
        %v585 = vmul.f32 %v584, %v339
        %v586 = vmul.f32 %v584, %v340
        %v587 = vmul.f32 %v584, %v341
        %v591 = vrot.slane %v585, 1
        %v592 = vrot.slane %v586, 1
        %v593 = vsel %vm518, %v591, %v592
        %v594 = vrot.slane %v587, 1
        %v595 = vsel %vm518, %v592, %v594
        %596 = vrot.lane.b32.xlu0 %v593, 126
        %v597 = vpop.permute.xlu0 %596
        %598 = vrot.lane.b32.xlu0 %v595, 126
        %v599 = vpop.permute.xlu0 %598
        %v602 = vadd.f32 %v582, %v597
        %v603 = vadd.f32 %v583, %v599
        %v604 = vstv %s299
        %v605 = vmul.f32 %v604, %v342
        %v606 = vmul.f32 %v604, %v343
        %v607 = vmul.f32 %v604, %v344
        %v611 = vrot.slane %v605, 1
        %v612 = vrot.slane %v606, 1
        %v613 = vsel %vm518, %v611, %v612
        %v614 = vrot.slane %v607, 1
        %v615 = vsel %vm518, %v612, %v614
        %616 = vrot.lane.b32.xlu0 %v613, 126
        %v617 = vpop.permute.xlu0 %616
        %618 = vrot.lane.b32.xlu0 %v615, 126
        %v619 = vpop.permute.xlu0 %618
        %v622 = vadd.f32 %v602, %v617
        %v623 = vadd.f32 %v603, %v619
        %v624 = vstv %s251
        %v625 = vmul.f32 %v624, %v339
        %v626 = vmul.f32 %v624, %v340
        %v627 = vmul.f32 %v624, %v341
        %v631 = vrot.slane %v625, 1
        %v632 = vrot.slane %v626, 1
        %v633 = vsel %vm518, %v631, %v632
        %v634 = vrot.slane %v627, 1
        %v635 = vsel %vm518, %v632, %v634
        %636 = vrot.lane.b32.xlu0 %v633, 125
        %v637 = vpop.permute.xlu0 %636
        %638 = vrot.lane.b32.xlu0 %v635, 125
        %v639 = vpop.permute.xlu0 %638
        %v642 = vadd.f32 %v622, %v637
        %v643 = vadd.f32 %v623, %v639
        %v644 = vstv %s300
        %v645 = vmul.f32 %v644, %v342
        %v646 = vmul.f32 %v644, %v343
        %v647 = vmul.f32 %v644, %v344
        %v651 = vrot.slane %v645, 1
        %v652 = vrot.slane %v646, 1
        %v653 = vsel %vm518, %v651, %v652
        %v654 = vrot.slane %v647, 1
        %v655 = vsel %vm518, %v652, %v654
        %656 = vrot.lane.b32.xlu0 %v653, 125
        %v657 = vpop.permute.xlu0 %656
        %658 = vrot.lane.b32.xlu0 %v655, 125
        %v659 = vpop.permute.xlu0 %658
        %v662 = vadd.f32 %v642, %v657
        %v663 = vadd.f32 %v643, %v659
        %v664 = vstv %s252
        %v665 = vmul.f32 %v664, %v339
        %v666 = vmul.f32 %v664, %v340
        %v667 = vmul.f32 %v664, %v341
        %v671 = vrot.slane %v665, 1
        %v672 = vrot.slane %v666, 1
        %v673 = vsel %vm518, %v671, %v672
        %v674 = vrot.slane %v667, 1
        %v675 = vsel %vm518, %v672, %v674
        %676 = vrot.lane.b32.xlu0 %v673, 124
        %v677 = vpop.permute.xlu0 %676
        %678 = vrot.lane.b32.xlu0 %v675, 124
        %v679 = vpop.permute.xlu0 %678
        %v682 = vadd.f32 %v662, %v677
        %v683 = vadd.f32 %v663, %v679
        %v684 = vstv %s301
        %v685 = vmul.f32 %v684, %v342
        %v686 = vmul.f32 %v684, %v343
        %v687 = vmul.f32 %v684, %v344
        %v691 = vrot.slane %v685, 1
        %v692 = vrot.slane %v686, 1
        %v693 = vsel %vm518, %v691, %v692
        %v694 = vrot.slane %v687, 1
        %v695 = vsel %vm518, %v692, %v694
        %696 = vrot.lane.b32.xlu0 %v693, 124
        %v697 = vpop.permute.xlu0 %696
        %698 = vrot.lane.b32.xlu0 %v695, 124
        %v699 = vpop.permute.xlu0 %698
        %v702 = vadd.f32 %v682, %v697
        %v703 = vadd.f32 %v683, %v699
        %v704 = vstv %s253
        %v705 = vmul.f32 %v704, %v339
        %v706 = vmul.f32 %v704, %v340
        %v707 = vmul.f32 %v704, %v341
        %v711 = vrot.slane %v705, 1
        %v712 = vrot.slane %v706, 1
        %v713 = vsel %vm518, %v711, %v712
        %v714 = vrot.slane %v707, 1
        %v715 = vsel %vm518, %v712, %v714
        %716 = vrot.lane.b32.xlu0 %v713, 123
        %v717 = vpop.permute.xlu0 %716
        %718 = vrot.lane.b32.xlu0 %v715, 123
        %v719 = vpop.permute.xlu0 %718
        %v722 = vadd.f32 %v702, %v717
        %v723 = vadd.f32 %v703, %v719
        %v724 = vstv %s302
        %v725 = vmul.f32 %v724, %v342
        %v726 = vmul.f32 %v724, %v343
        %v727 = vmul.f32 %v724, %v344
        %v731 = vrot.slane %v725, 1
        %v732 = vrot.slane %v726, 1
        %v733 = vsel %vm518, %v731, %v732
        %v734 = vrot.slane %v727, 1
        %v735 = vsel %vm518, %v732, %v734
        %736 = vrot.lane.b32.xlu0 %v733, 123
        %v737 = vpop.permute.xlu0 %736
        %738 = vrot.lane.b32.xlu0 %v735, 123
        %v739 = vpop.permute.xlu0 %738
        %v742 = vadd.f32 %v722, %v737
        %v743 = vadd.f32 %v723, %v739
        %v744 = vstv %s254
        %v745 = vmul.f32 %v744, %v339
        %v746 = vmul.f32 %v744, %v340
        %v747 = vmul.f32 %v744, %v341
        %v751 = vrot.slane %v745, 1
        %v752 = vrot.slane %v746, 1
        %v753 = vsel %vm518, %v751, %v752
        %v754 = vrot.slane %v747, 1
        %v755 = vsel %vm518, %v752, %v754
        %756 = vrot.lane.b32.xlu0 %v753, 122
        %v757 = vpop.permute.xlu0 %756
        %758 = vrot.lane.b32.xlu0 %v755, 122
        %v759 = vpop.permute.xlu0 %758
        %v762 = vadd.f32 %v742, %v757
        %v763 = vadd.f32 %v743, %v759
        %v764 = vstv %s303
        %v765 = vmul.f32 %v764, %v342
        %v766 = vmul.f32 %v764, %v343
        %v767 = vmul.f32 %v764, %v344
        %v771 = vrot.slane %v765, 1
        %v772 = vrot.slane %v766, 1
        %v773 = vsel %vm518, %v771, %v772
        %v774 = vrot.slane %v767, 1
        %v775 = vsel %vm518, %v772, %v774
        %776 = vrot.lane.b32.xlu0 %v773, 122
        %v777 = vpop.permute.xlu0 %776
        %778 = vrot.lane.b32.xlu0 %v775, 122
        %v779 = vpop.permute.xlu0 %778
        %v782 = vadd.f32 %v762, %v777
        %v783 = vadd.f32 %v763, %v779
        %v784 = vstv %s255
        %v785 = vmul.f32 %v784, %v339
        %v786 = vmul.f32 %v784, %v340
        %v787 = vmul.f32 %v784, %v341
        %vm791 = vcmask 1045504
        %v792 = vrot.slane %v785, 2
        %v793 = vrot.slane %v786, 2
        %v794 = vsel %vm791, %v792, %v793
        %v795 = vrot.slane %v787, 2
        %v796 = vsel %vm791, %v793, %v795
        %v799 = vadd.f32 %v782, %v794
        %v800 = vadd.f32 %v783, %v796
        %v801 = vstv %s304
        %v802 = vmul.f32 %v801, %v342
        %v803 = vmul.f32 %v801, %v343
        %v804 = vmul.f32 %v801, %v344
        %v808 = vrot.slane %v802, 2
        %v809 = vrot.slane %v803, 2
        %v810 = vsel %vm791, %v808, %v809
        %v811 = vrot.slane %v804, 2
        %v812 = vsel %vm791, %v809, %v811
        %v815 = vadd.f32 %v799, %v810
        %v816 = vadd.f32 %v800, %v812
        %v817 = vstv %s256
        %v818 = vmul.f32 %v817, %v339
        %v819 = vmul.f32 %v817, %v340
        %v820 = vmul.f32 %v817, %v341
        %v824 = vrot.slane %v818, 2
        %v825 = vrot.slane %v819, 2
        %v826 = vsel %vm791, %v824, %v825
        %v827 = vrot.slane %v820, 2
        %v828 = vsel %vm791, %v825, %v827
        %829 = vrot.lane.b32.xlu0 %v826, 127
        %v830 = vpop.permute.xlu0 %829
        %831 = vrot.lane.b32.xlu0 %v828, 127
        %v832 = vpop.permute.xlu0 %831
        %v835 = vadd.f32 %v815, %v830
        %v836 = vadd.f32 %v816, %v832
        %v837 = vstv %s305
        %v838 = vmul.f32 %v837, %v342
        %v839 = vmul.f32 %v837, %v343
        %v840 = vmul.f32 %v837, %v344
        %v844 = vrot.slane %v838, 2
        %v845 = vrot.slane %v839, 2
        %v846 = vsel %vm791, %v844, %v845
        %v847 = vrot.slane %v840, 2
        %v848 = vsel %vm791, %v845, %v847
        %849 = vrot.lane.b32.xlu0 %v846, 127
        %v850 = vpop.permute.xlu0 %849
        %851 = vrot.lane.b32.xlu0 %v848, 127
        %v852 = vpop.permute.xlu0 %851
        %v855 = vadd.f32 %v835, %v850
        %v856 = vadd.f32 %v836, %v852
        %v857 = vstv %s257
        %v858 = vmul.f32 %v857, %v339
        %v859 = vmul.f32 %v857, %v340
        %v860 = vmul.f32 %v857, %v341
        %v864 = vrot.slane %v858, 2
        %v865 = vrot.slane %v859, 2
        %v866 = vsel %vm791, %v864, %v865
        %v867 = vrot.slane %v860, 2
        %v868 = vsel %vm791, %v865, %v867
        %869 = vrot.lane.b32.xlu0 %v866, 126
        %v870 = vpop.permute.xlu0 %869
        %871 = vrot.lane.b32.xlu0 %v868, 126
        %v872 = vpop.permute.xlu0 %871
        %v875 = vadd.f32 %v855, %v870
        %v876 = vadd.f32 %v856, %v872
        %v877 = vstv %s306
        %v878 = vmul.f32 %v877, %v342
        %v879 = vmul.f32 %v877, %v343
        %v880 = vmul.f32 %v877, %v344
        %v884 = vrot.slane %v878, 2
        %v885 = vrot.slane %v879, 2
        %v886 = vsel %vm791, %v884, %v885
        %v887 = vrot.slane %v880, 2
        %v888 = vsel %vm791, %v885, %v887
        %889 = vrot.lane.b32.xlu0 %v886, 126
        %v890 = vpop.permute.xlu0 %889
        %891 = vrot.lane.b32.xlu0 %v888, 126
        %v892 = vpop.permute.xlu0 %891
        %v895 = vadd.f32 %v875, %v890
        %v896 = vadd.f32 %v876, %v892
        %v897 = vstv %s258
        %v898 = vmul.f32 %v897, %v339
        %v899 = vmul.f32 %v897, %v340
        %v900 = vmul.f32 %v897, %v341
        %v904 = vrot.slane %v898, 2
        %v905 = vrot.slane %v899, 2
        %v906 = vsel %vm791, %v904, %v905
        %v907 = vrot.slane %v900, 2
        %v908 = vsel %vm791, %v905, %v907
        %909 = vrot.lane.b32.xlu0 %v906, 125
        %v910 = vpop.permute.xlu0 %909
        %911 = vrot.lane.b32.xlu0 %v908, 125
        %v912 = vpop.permute.xlu0 %911
        %v915 = vadd.f32 %v895, %v910
        %v916 = vadd.f32 %v896, %v912
        %v917 = vstv %s307
        %v918 = vmul.f32 %v917, %v342
        %v919 = vmul.f32 %v917, %v343
        %v920 = vmul.f32 %v917, %v344
        %v924 = vrot.slane %v918, 2
        %v925 = vrot.slane %v919, 2
        %v926 = vsel %vm791, %v924, %v925
        %v927 = vrot.slane %v920, 2
        %v928 = vsel %vm791, %v925, %v927
        %929 = vrot.lane.b32.xlu0 %v926, 125
        %v930 = vpop.permute.xlu0 %929
        %931 = vrot.lane.b32.xlu0 %v928, 125
        %v932 = vpop.permute.xlu0 %931
        %v935 = vadd.f32 %v915, %v930
        %v936 = vadd.f32 %v916, %v932
        %v937 = vstv %s259
        %v938 = vmul.f32 %v937, %v339
        %v939 = vmul.f32 %v937, %v340
        %v940 = vmul.f32 %v937, %v341
        %v944 = vrot.slane %v938, 2
        %v945 = vrot.slane %v939, 2
        %v946 = vsel %vm791, %v944, %v945
        %v947 = vrot.slane %v940, 2
        %v948 = vsel %vm791, %v945, %v947
        %949 = vrot.lane.b32.xlu0 %v946, 124
        %v950 = vpop.permute.xlu0 %949
        %951 = vrot.lane.b32.xlu0 %v948, 124
        %v952 = vpop.permute.xlu0 %951
        %v955 = vadd.f32 %v935, %v950
        %v956 = vadd.f32 %v936, %v952
        %v957 = vstv %s308
        %v958 = vmul.f32 %v957, %v342
        %v959 = vmul.f32 %v957, %v343
        %v960 = vmul.f32 %v957, %v344
        %v964 = vrot.slane %v958, 2
        %v965 = vrot.slane %v959, 2
        %v966 = vsel %vm791, %v964, %v965
        %v967 = vrot.slane %v960, 2
        %v968 = vsel %vm791, %v965, %v967
        %969 = vrot.lane.b32.xlu0 %v966, 124
        %v970 = vpop.permute.xlu0 %969
        %971 = vrot.lane.b32.xlu0 %v968, 124
        %v972 = vpop.permute.xlu0 %971
        %v975 = vadd.f32 %v955, %v970
        %v976 = vadd.f32 %v956, %v972
        %v977 = vstv %s260
        %v978 = vmul.f32 %v977, %v339
        %v979 = vmul.f32 %v977, %v340
        %v980 = vmul.f32 %v977, %v341
        %v984 = vrot.slane %v978, 2
        %v985 = vrot.slane %v979, 2
        %v986 = vsel %vm791, %v984, %v985
        %v987 = vrot.slane %v980, 2
        %v988 = vsel %vm791, %v985, %v987
        %989 = vrot.lane.b32.xlu0 %v986, 123
        %v990 = vpop.permute.xlu0 %989
        %991 = vrot.lane.b32.xlu0 %v988, 123
        %v992 = vpop.permute.xlu0 %991
        %v995 = vadd.f32 %v975, %v990
        %v996 = vadd.f32 %v976, %v992
        %v997 = vstv %s309
        %v998 = vmul.f32 %v997, %v342
        %v999 = vmul.f32 %v997, %v343
        %v1000 = vmul.f32 %v997, %v344
        %v1004 = vrot.slane %v998, 2
        %v1005 = vrot.slane %v999, 2
        %v1006 = vsel %vm791, %v1004, %v1005
        %v1007 = vrot.slane %v1000, 2
        %v1008 = vsel %vm791, %v1005, %v1007
        %1009 = vrot.lane.b32.xlu0 %v1006, 123
        %v1010 = vpop.permute.xlu0 %1009
        %1011 = vrot.lane.b32.xlu0 %v1008, 123
        %v1012 = vpop.permute.xlu0 %1011
        %v1015 = vadd.f32 %v995, %v1010
        %v1016 = vadd.f32 %v996, %v1012
        %v1017 = vstv %s261
        %v1018 = vmul.f32 %v1017, %v339
        %v1019 = vmul.f32 %v1017, %v340
        %v1020 = vmul.f32 %v1017, %v341
        %v1024 = vrot.slane %v1018, 2
        %v1025 = vrot.slane %v1019, 2
        %v1026 = vsel %vm791, %v1024, %v1025
        %v1027 = vrot.slane %v1020, 2
        %v1028 = vsel %vm791, %v1025, %v1027
        %1029 = vrot.lane.b32.xlu0 %v1026, 122
        %v1030 = vpop.permute.xlu0 %1029
        %1031 = vrot.lane.b32.xlu0 %v1028, 122
        %v1032 = vpop.permute.xlu0 %1031
        %v1035 = vadd.f32 %v1015, %v1030
        %v1036 = vadd.f32 %v1016, %v1032
        %v1037 = vstv %s310
        %v1038 = vmul.f32 %v1037, %v342
        %v1039 = vmul.f32 %v1037, %v343
        %v1040 = vmul.f32 %v1037, %v344
        %v1044 = vrot.slane %v1038, 2
        %v1045 = vrot.slane %v1039, 2
        %v1046 = vsel %vm791, %v1044, %v1045
        %v1047 = vrot.slane %v1040, 2
        %v1048 = vsel %vm791, %v1045, %v1047
        %1049 = vrot.lane.b32.xlu0 %v1046, 122
        %v1050 = vpop.permute.xlu0 %1049
        %1051 = vrot.lane.b32.xlu0 %v1048, 122
        %v1052 = vpop.permute.xlu0 %1051
        %v1055 = vadd.f32 %v1035, %v1050
        %v1056 = vadd.f32 %v1036, %v1052
        %v1057 = vstv %s262
        %v1058 = vmul.f32 %v1057, %v339
        %v1059 = vmul.f32 %v1057, %v340
        %v1060 = vmul.f32 %v1057, %v341
        %vm1064 = vcmask 1044480
        %v1065 = vrot.slane %v1058, 3
        %v1066 = vrot.slane %v1059, 3
        %v1067 = vsel %vm1064, %v1065, %v1066
        %v1068 = vrot.slane %v1060, 3
        %v1069 = vsel %vm1064, %v1066, %v1068
        %v1072 = vadd.f32 %v1055, %v1067
        %v1073 = vadd.f32 %v1056, %v1069
        %v1074 = vstv %s311
        %v1075 = vmul.f32 %v1074, %v342
        %v1076 = vmul.f32 %v1074, %v343
        %v1077 = vmul.f32 %v1074, %v344
        %v1081 = vrot.slane %v1075, 3
        %v1082 = vrot.slane %v1076, 3
        %v1083 = vsel %vm1064, %v1081, %v1082
        %v1084 = vrot.slane %v1077, 3
        %v1085 = vsel %vm1064, %v1082, %v1084
        %v1088 = vadd.f32 %v1072, %v1083
        %v1089 = vadd.f32 %v1073, %v1085
        %v1090 = vstv %s263
        %v1091 = vmul.f32 %v1090, %v339
        %v1092 = vmul.f32 %v1090, %v340
        %v1093 = vmul.f32 %v1090, %v341
        %v1097 = vrot.slane %v1091, 3
        %v1098 = vrot.slane %v1092, 3
        %v1099 = vsel %vm1064, %v1097, %v1098
        %v1100 = vrot.slane %v1093, 3
        %v1101 = vsel %vm1064, %v1098, %v1100
        %1102 = vrot.lane.b32.xlu0 %v1099, 127
        %v1103 = vpop.permute.xlu0 %1102
        %1104 = vrot.lane.b32.xlu0 %v1101, 127
        %v1105 = vpop.permute.xlu0 %1104
        %v1108 = vadd.f32 %v1088, %v1103
        %v1109 = vadd.f32 %v1089, %v1105
        %v1110 = vstv %s312
        %v1111 = vmul.f32 %v1110, %v342
        %v1112 = vmul.f32 %v1110, %v343
        %v1113 = vmul.f32 %v1110, %v344
        %v1117 = vrot.slane %v1111, 3
        %v1118 = vrot.slane %v1112, 3
        %v1119 = vsel %vm1064, %v1117, %v1118
        %v1120 = vrot.slane %v1113, 3
        %v1121 = vsel %vm1064, %v1118, %v1120
        %1122 = vrot.lane.b32.xlu0 %v1119, 127
        %v1123 = vpop.permute.xlu0 %1122
        %1124 = vrot.lane.b32.xlu0 %v1121, 127
        %v1125 = vpop.permute.xlu0 %1124
        %v1128 = vadd.f32 %v1108, %v1123
        %v1129 = vadd.f32 %v1109, %v1125
        %v1130 = vstv %s264
        %v1131 = vmul.f32 %v1130, %v339
        %v1132 = vmul.f32 %v1130, %v340
        %v1133 = vmul.f32 %v1130, %v341
        %v1137 = vrot.slane %v1131, 3
        %v1138 = vrot.slane %v1132, 3
        %v1139 = vsel %vm1064, %v1137, %v1138
        %v1140 = vrot.slane %v1133, 3
        %v1141 = vsel %vm1064, %v1138, %v1140
        %1142 = vrot.lane.b32.xlu0 %v1139, 126
        %v1143 = vpop.permute.xlu0 %1142
        %1144 = vrot.lane.b32.xlu0 %v1141, 126
        %v1145 = vpop.permute.xlu0 %1144
        %v1148 = vadd.f32 %v1128, %v1143
        %v1149 = vadd.f32 %v1129, %v1145
        %v1150 = vstv %s313
        %v1151 = vmul.f32 %v1150, %v342
        %v1152 = vmul.f32 %v1150, %v343
        %v1153 = vmul.f32 %v1150, %v344
        %v1157 = vrot.slane %v1151, 3
        %v1158 = vrot.slane %v1152, 3
        %v1159 = vsel %vm1064, %v1157, %v1158
        %v1160 = vrot.slane %v1153, 3
        %v1161 = vsel %vm1064, %v1158, %v1160
        %1162 = vrot.lane.b32.xlu0 %v1159, 126
        %v1163 = vpop.permute.xlu0 %1162
        %1164 = vrot.lane.b32.xlu0 %v1161, 126
        %v1165 = vpop.permute.xlu0 %1164
        %v1168 = vadd.f32 %v1148, %v1163
        %v1169 = vadd.f32 %v1149, %v1165
        %v1170 = vstv %s265
        %v1171 = vmul.f32 %v1170, %v339
        %v1172 = vmul.f32 %v1170, %v340
        %v1173 = vmul.f32 %v1170, %v341
        %v1177 = vrot.slane %v1171, 3
        %v1178 = vrot.slane %v1172, 3
        %v1179 = vsel %vm1064, %v1177, %v1178
        %v1180 = vrot.slane %v1173, 3
        %v1181 = vsel %vm1064, %v1178, %v1180
        %1182 = vrot.lane.b32.xlu0 %v1179, 125
        %v1183 = vpop.permute.xlu0 %1182
        %1184 = vrot.lane.b32.xlu0 %v1181, 125
        %v1185 = vpop.permute.xlu0 %1184
        %v1188 = vadd.f32 %v1168, %v1183
        %v1189 = vadd.f32 %v1169, %v1185
        %v1190 = vstv %s314
        %v1191 = vmul.f32 %v1190, %v342
        %v1192 = vmul.f32 %v1190, %v343
        %v1193 = vmul.f32 %v1190, %v344
        %v1197 = vrot.slane %v1191, 3
        %v1198 = vrot.slane %v1192, 3
        %v1199 = vsel %vm1064, %v1197, %v1198
        %v1200 = vrot.slane %v1193, 3
        %v1201 = vsel %vm1064, %v1198, %v1200
        %1202 = vrot.lane.b32.xlu0 %v1199, 125
        %v1203 = vpop.permute.xlu0 %1202
        %1204 = vrot.lane.b32.xlu0 %v1201, 125
        %v1205 = vpop.permute.xlu0 %1204
        %v1208 = vadd.f32 %v1188, %v1203
        %v1209 = vadd.f32 %v1189, %v1205
        %v1210 = vstv %s266
        %v1211 = vmul.f32 %v1210, %v339
        %v1212 = vmul.f32 %v1210, %v340
        %v1213 = vmul.f32 %v1210, %v341
        %v1217 = vrot.slane %v1211, 3
        %v1218 = vrot.slane %v1212, 3
        %v1219 = vsel %vm1064, %v1217, %v1218
        %v1220 = vrot.slane %v1213, 3
        %v1221 = vsel %vm1064, %v1218, %v1220
        %1222 = vrot.lane.b32.xlu0 %v1219, 124
        %v1223 = vpop.permute.xlu0 %1222
        %1224 = vrot.lane.b32.xlu0 %v1221, 124
        %v1225 = vpop.permute.xlu0 %1224
        %v1228 = vadd.f32 %v1208, %v1223
        %v1229 = vadd.f32 %v1209, %v1225
        %v1230 = vstv %s315
        %v1231 = vmul.f32 %v1230, %v342
        %v1232 = vmul.f32 %v1230, %v343
        %v1233 = vmul.f32 %v1230, %v344
        %v1237 = vrot.slane %v1231, 3
        %v1238 = vrot.slane %v1232, 3
        %v1239 = vsel %vm1064, %v1237, %v1238
        %v1240 = vrot.slane %v1233, 3
        %v1241 = vsel %vm1064, %v1238, %v1240
        %1242 = vrot.lane.b32.xlu0 %v1239, 124
        %v1243 = vpop.permute.xlu0 %1242
        %1244 = vrot.lane.b32.xlu0 %v1241, 124
        %v1245 = vpop.permute.xlu0 %1244
        %v1248 = vadd.f32 %v1228, %v1243
        %v1249 = vadd.f32 %v1229, %v1245
        %v1250 = vstv %s267
        %v1251 = vmul.f32 %v1250, %v339
        %v1252 = vmul.f32 %v1250, %v340
        %v1253 = vmul.f32 %v1250, %v341
        %v1257 = vrot.slane %v1251, 3
        %v1258 = vrot.slane %v1252, 3
        %v1259 = vsel %vm1064, %v1257, %v1258
        %v1260 = vrot.slane %v1253, 3
        %v1261 = vsel %vm1064, %v1258, %v1260
        %1262 = vrot.lane.b32.xlu0 %v1259, 123
        %v1263 = vpop.permute.xlu0 %1262
        %1264 = vrot.lane.b32.xlu0 %v1261, 123
        %v1265 = vpop.permute.xlu0 %1264
        %v1268 = vadd.f32 %v1248, %v1263
        %v1269 = vadd.f32 %v1249, %v1265
        %v1270 = vstv %s316
        %v1271 = vmul.f32 %v1270, %v342
        %v1272 = vmul.f32 %v1270, %v343
        %v1273 = vmul.f32 %v1270, %v344
        %v1277 = vrot.slane %v1271, 3
        %v1278 = vrot.slane %v1272, 3
        %v1279 = vsel %vm1064, %v1277, %v1278
        %v1280 = vrot.slane %v1273, 3
        %v1281 = vsel %vm1064, %v1278, %v1280
        %1282 = vrot.lane.b32.xlu0 %v1279, 123
        %v1283 = vpop.permute.xlu0 %1282
        %1284 = vrot.lane.b32.xlu0 %v1281, 123
        %v1285 = vpop.permute.xlu0 %1284
        %v1288 = vadd.f32 %v1268, %v1283
        %v1289 = vadd.f32 %v1269, %v1285
        %v1290 = vstv %s268
        %v1291 = vmul.f32 %v1290, %v339
        %v1292 = vmul.f32 %v1290, %v340
        %v1293 = vmul.f32 %v1290, %v341
        %v1297 = vrot.slane %v1291, 3
        %v1298 = vrot.slane %v1292, 3
        %v1299 = vsel %vm1064, %v1297, %v1298
        %v1300 = vrot.slane %v1293, 3
        %v1301 = vsel %vm1064, %v1298, %v1300
        %1302 = vrot.lane.b32.xlu0 %v1299, 122
        %v1303 = vpop.permute.xlu0 %1302
        %1304 = vrot.lane.b32.xlu0 %v1301, 122
        %v1305 = vpop.permute.xlu0 %1304
        %v1308 = vadd.f32 %v1288, %v1303
        %v1309 = vadd.f32 %v1289, %v1305
        %v1310 = vstv %s317
        %v1311 = vmul.f32 %v1310, %v342
        %v1312 = vmul.f32 %v1310, %v343
        %v1313 = vmul.f32 %v1310, %v344
        %v1317 = vrot.slane %v1311, 3
        %v1318 = vrot.slane %v1312, 3
        %v1319 = vsel %vm1064, %v1317, %v1318
        %v1320 = vrot.slane %v1313, 3
        %v1321 = vsel %vm1064, %v1318, %v1320
        %1322 = vrot.lane.b32.xlu0 %v1319, 122
        %v1323 = vpop.permute.xlu0 %1322
        %1324 = vrot.lane.b32.xlu0 %v1321, 122
        %v1325 = vpop.permute.xlu0 %1324
        %v1328 = vadd.f32 %v1308, %v1323
        %v1329 = vadd.f32 %v1309, %v1325
        %v1330 = vstv %s269
        %v1331 = vmul.f32 %v1330, %v339
        %v1332 = vmul.f32 %v1330, %v340
        %v1333 = vmul.f32 %v1330, %v341
        %vm1337 = vcmask 1043456
        %v1338 = vrot.slane %v1331, 4
        %v1339 = vrot.slane %v1332, 4
        %v1340 = vsel %vm1337, %v1338, %v1339
        %v1341 = vrot.slane %v1333, 4
        %v1342 = vsel %vm1337, %v1339, %v1341
        %v1345 = vadd.f32 %v1328, %v1340
        %v1346 = vadd.f32 %v1329, %v1342
        %v1347 = vstv %s318
        %v1348 = vmul.f32 %v1347, %v342
        %v1349 = vmul.f32 %v1347, %v343
        %v1350 = vmul.f32 %v1347, %v344
        %v1354 = vrot.slane %v1348, 4
        %v1355 = vrot.slane %v1349, 4
        %v1356 = vsel %vm1337, %v1354, %v1355
        %v1357 = vrot.slane %v1350, 4
        %v1358 = vsel %vm1337, %v1355, %v1357
        %v1361 = vadd.f32 %v1345, %v1356
        %v1362 = vadd.f32 %v1346, %v1358
        %v1363 = vstv %s270
        %v1364 = vmul.f32 %v1363, %v339
        %v1365 = vmul.f32 %v1363, %v340
        %v1366 = vmul.f32 %v1363, %v341
        %v1370 = vrot.slane %v1364, 4
        %v1371 = vrot.slane %v1365, 4
        %v1372 = vsel %vm1337, %v1370, %v1371
        %v1373 = vrot.slane %v1366, 4
        %v1374 = vsel %vm1337, %v1371, %v1373
        %1375 = vrot.lane.b32.xlu0 %v1372, 127
        %v1376 = vpop.permute.xlu0 %1375
        %1377 = vrot.lane.b32.xlu0 %v1374, 127
        %v1378 = vpop.permute.xlu0 %1377
        %v1381 = vadd.f32 %v1361, %v1376
        %v1382 = vadd.f32 %v1362, %v1378
        %v1383 = vstv %s319
        %v1384 = vmul.f32 %v1383, %v342
        %v1385 = vmul.f32 %v1383, %v343
        %v1386 = vmul.f32 %v1383, %v344
        %v1390 = vrot.slane %v1384, 4
        %v1391 = vrot.slane %v1385, 4
        %v1392 = vsel %vm1337, %v1390, %v1391
        %v1393 = vrot.slane %v1386, 4
        %v1394 = vsel %vm1337, %v1391, %v1393
        %1395 = vrot.lane.b32.xlu0 %v1392, 127
        %v1396 = vpop.permute.xlu0 %1395
        %1397 = vrot.lane.b32.xlu0 %v1394, 127
        %v1398 = vpop.permute.xlu0 %1397
        %v1401 = vadd.f32 %v1381, %v1396
        %v1402 = vadd.f32 %v1382, %v1398
        %v1403 = vstv %s271
        %v1404 = vmul.f32 %v1403, %v339
        %v1405 = vmul.f32 %v1403, %v340
        %v1406 = vmul.f32 %v1403, %v341
        %v1410 = vrot.slane %v1404, 4
        %v1411 = vrot.slane %v1405, 4
        %v1412 = vsel %vm1337, %v1410, %v1411
        %v1413 = vrot.slane %v1406, 4
        %v1414 = vsel %vm1337, %v1411, %v1413
        %1415 = vrot.lane.b32.xlu0 %v1412, 126
        %v1416 = vpop.permute.xlu0 %1415
        %1417 = vrot.lane.b32.xlu0 %v1414, 126
        %v1418 = vpop.permute.xlu0 %1417
        %v1421 = vadd.f32 %v1401, %v1416
        %v1422 = vadd.f32 %v1402, %v1418
        %v1423 = vstv %s320
        %v1424 = vmul.f32 %v1423, %v342
        %v1425 = vmul.f32 %v1423, %v343
        %v1426 = vmul.f32 %v1423, %v344
        %v1430 = vrot.slane %v1424, 4
        %v1431 = vrot.slane %v1425, 4
        %v1432 = vsel %vm1337, %v1430, %v1431
        %v1433 = vrot.slane %v1426, 4
        %v1434 = vsel %vm1337, %v1431, %v1433
        %1435 = vrot.lane.b32.xlu0 %v1432, 126
        %v1436 = vpop.permute.xlu0 %1435
        %1437 = vrot.lane.b32.xlu0 %v1434, 126
        %v1438 = vpop.permute.xlu0 %1437
        %v1441 = vadd.f32 %v1421, %v1436
        %v1442 = vadd.f32 %v1422, %v1438
        %v1443 = vstv %s272
        %v1444 = vmul.f32 %v1443, %v339
        %v1445 = vmul.f32 %v1443, %v340
        %v1446 = vmul.f32 %v1443, %v341
        %v1450 = vrot.slane %v1444, 4
        %v1451 = vrot.slane %v1445, 4
        %v1452 = vsel %vm1337, %v1450, %v1451
        %v1453 = vrot.slane %v1446, 4
        %v1454 = vsel %vm1337, %v1451, %v1453
        %1455 = vrot.lane.b32.xlu0 %v1452, 125
        %v1456 = vpop.permute.xlu0 %1455
        %1457 = vrot.lane.b32.xlu0 %v1454, 125
        %v1458 = vpop.permute.xlu0 %1457
        %v1461 = vadd.f32 %v1441, %v1456
        %v1462 = vadd.f32 %v1442, %v1458
        %v1463 = vstv %s321
        %v1464 = vmul.f32 %v1463, %v342
        %v1465 = vmul.f32 %v1463, %v343
        %v1466 = vmul.f32 %v1463, %v344
        %v1470 = vrot.slane %v1464, 4
        %v1471 = vrot.slane %v1465, 4
        %v1472 = vsel %vm1337, %v1470, %v1471
        %v1473 = vrot.slane %v1466, 4
        %v1474 = vsel %vm1337, %v1471, %v1473
        %1475 = vrot.lane.b32.xlu0 %v1472, 125
        %v1476 = vpop.permute.xlu0 %1475
        %1477 = vrot.lane.b32.xlu0 %v1474, 125
        %v1478 = vpop.permute.xlu0 %1477
        %v1481 = vadd.f32 %v1461, %v1476
        %v1482 = vadd.f32 %v1462, %v1478
        %v1483 = vstv %s273
        %v1484 = vmul.f32 %v1483, %v339
        %v1485 = vmul.f32 %v1483, %v340
        %v1486 = vmul.f32 %v1483, %v341
        %v1490 = vrot.slane %v1484, 4
        %v1491 = vrot.slane %v1485, 4
        %v1492 = vsel %vm1337, %v1490, %v1491
        %v1493 = vrot.slane %v1486, 4
        %v1494 = vsel %vm1337, %v1491, %v1493
        %1495 = vrot.lane.b32.xlu0 %v1492, 124
        %v1496 = vpop.permute.xlu0 %1495
        %1497 = vrot.lane.b32.xlu0 %v1494, 124
        %v1498 = vpop.permute.xlu0 %1497
        %v1501 = vadd.f32 %v1481, %v1496
        %v1502 = vadd.f32 %v1482, %v1498
        %v1503 = vstv %s322
        %v1504 = vmul.f32 %v1503, %v342
        %v1505 = vmul.f32 %v1503, %v343
        %v1506 = vmul.f32 %v1503, %v344
        %v1510 = vrot.slane %v1504, 4
        %v1511 = vrot.slane %v1505, 4
        %v1512 = vsel %vm1337, %v1510, %v1511
        %v1513 = vrot.slane %v1506, 4
        %v1514 = vsel %vm1337, %v1511, %v1513
        %1515 = vrot.lane.b32.xlu0 %v1512, 124
        %v1516 = vpop.permute.xlu0 %1515
        %1517 = vrot.lane.b32.xlu0 %v1514, 124
        %v1518 = vpop.permute.xlu0 %1517
        %v1521 = vadd.f32 %v1501, %v1516
        %v1522 = vadd.f32 %v1502, %v1518
        %v1523 = vstv %s274
        %v1524 = vmul.f32 %v1523, %v339
        %v1525 = vmul.f32 %v1523, %v340
        %v1526 = vmul.f32 %v1523, %v341
        %v1530 = vrot.slane %v1524, 4
        %v1531 = vrot.slane %v1525, 4
        %v1532 = vsel %vm1337, %v1530, %v1531
        %v1533 = vrot.slane %v1526, 4
        %v1534 = vsel %vm1337, %v1531, %v1533
        %1535 = vrot.lane.b32.xlu0 %v1532, 123
        %v1536 = vpop.permute.xlu0 %1535
        %1537 = vrot.lane.b32.xlu0 %v1534, 123
        %v1538 = vpop.permute.xlu0 %1537
        %v1541 = vadd.f32 %v1521, %v1536
        %v1542 = vadd.f32 %v1522, %v1538
        %v1543 = vstv %s323
        %v1544 = vmul.f32 %v1543, %v342
        %v1545 = vmul.f32 %v1543, %v343
        %v1546 = vmul.f32 %v1543, %v344
        %v1550 = vrot.slane %v1544, 4
        %v1551 = vrot.slane %v1545, 4
        %v1552 = vsel %vm1337, %v1550, %v1551
        %v1553 = vrot.slane %v1546, 4
        %v1554 = vsel %vm1337, %v1551, %v1553
        %1555 = vrot.lane.b32.xlu0 %v1552, 123
        %v1556 = vpop.permute.xlu0 %1555
        %1557 = vrot.lane.b32.xlu0 %v1554, 123
        %v1558 = vpop.permute.xlu0 %1557
        %v1561 = vadd.f32 %v1541, %v1556
        %v1562 = vadd.f32 %v1542, %v1558
        %v1563 = vstv %s275
        %v1564 = vmul.f32 %v1563, %v339
        %v1565 = vmul.f32 %v1563, %v340
        %v1566 = vmul.f32 %v1563, %v341
        %v1570 = vrot.slane %v1564, 4
        %v1571 = vrot.slane %v1565, 4
        %v1572 = vsel %vm1337, %v1570, %v1571
        %v1573 = vrot.slane %v1566, 4
        %v1574 = vsel %vm1337, %v1571, %v1573
        %1575 = vrot.lane.b32.xlu0 %v1572, 122
        %v1576 = vpop.permute.xlu0 %1575
        %1577 = vrot.lane.b32.xlu0 %v1574, 122
        %v1578 = vpop.permute.xlu0 %1577
        %v1581 = vadd.f32 %v1561, %v1576
        %v1582 = vadd.f32 %v1562, %v1578
        %v1583 = vstv %s324
        %v1584 = vmul.f32 %v1583, %v342
        %v1585 = vmul.f32 %v1583, %v343
        %v1586 = vmul.f32 %v1583, %v344
        %v1590 = vrot.slane %v1584, 4
        %v1591 = vrot.slane %v1585, 4
        %v1592 = vsel %vm1337, %v1590, %v1591
        %v1593 = vrot.slane %v1586, 4
        %v1594 = vsel %vm1337, %v1591, %v1593
        %1595 = vrot.lane.b32.xlu0 %v1592, 122
        %v1596 = vpop.permute.xlu0 %1595
        %1597 = vrot.lane.b32.xlu0 %v1594, 122
        %v1598 = vpop.permute.xlu0 %1597
        %v1601 = vadd.f32 %v1581, %v1596
        %v1602 = vadd.f32 %v1582, %v1598
        %v1603 = vstv %s276
        %v1604 = vmul.f32 %v1603, %v339
        %v1605 = vmul.f32 %v1603, %v340
        %v1606 = vmul.f32 %v1603, %v341
        %vm1610 = vcmask 1042432
        %v1611 = vrot.slane %v1604, 5
        %v1612 = vrot.slane %v1605, 5
        %v1613 = vsel %vm1610, %v1611, %v1612
        %v1614 = vrot.slane %v1606, 5
        %v1615 = vsel %vm1610, %v1612, %v1614
        %v1618 = vadd.f32 %v1601, %v1613
        %v1619 = vadd.f32 %v1602, %v1615
        %v1620 = vstv %s325
        %v1621 = vmul.f32 %v1620, %v342
        %v1622 = vmul.f32 %v1620, %v343
        %v1623 = vmul.f32 %v1620, %v344
        %v1627 = vrot.slane %v1621, 5
        %v1628 = vrot.slane %v1622, 5
        %v1629 = vsel %vm1610, %v1627, %v1628
        %v1630 = vrot.slane %v1623, 5
        %v1631 = vsel %vm1610, %v1628, %v1630
        %v1634 = vadd.f32 %v1618, %v1629
        %v1635 = vadd.f32 %v1619, %v1631
        %v1636 = vstv %s277
        %v1637 = vmul.f32 %v1636, %v339
        %v1638 = vmul.f32 %v1636, %v340
        %v1639 = vmul.f32 %v1636, %v341
        %v1643 = vrot.slane %v1637, 5
        %v1644 = vrot.slane %v1638, 5
        %v1645 = vsel %vm1610, %v1643, %v1644
        %v1646 = vrot.slane %v1639, 5
        %v1647 = vsel %vm1610, %v1644, %v1646
        %1648 = vrot.lane.b32.xlu0 %v1645, 127
        %v1649 = vpop.permute.xlu0 %1648
        %1650 = vrot.lane.b32.xlu0 %v1647, 127
        %v1651 = vpop.permute.xlu0 %1650
        %v1654 = vadd.f32 %v1634, %v1649
        %v1655 = vadd.f32 %v1635, %v1651
        %v1656 = vstv %s326
        %v1657 = vmul.f32 %v1656, %v342
        %v1658 = vmul.f32 %v1656, %v343
        %v1659 = vmul.f32 %v1656, %v344
        %v1663 = vrot.slane %v1657, 5
        %v1664 = vrot.slane %v1658, 5
        %v1665 = vsel %vm1610, %v1663, %v1664
        %v1666 = vrot.slane %v1659, 5
        %v1667 = vsel %vm1610, %v1664, %v1666
        %1668 = vrot.lane.b32.xlu0 %v1665, 127
        %v1669 = vpop.permute.xlu0 %1668
        %1670 = vrot.lane.b32.xlu0 %v1667, 127
        %v1671 = vpop.permute.xlu0 %1670
        %v1674 = vadd.f32 %v1654, %v1669
        %v1675 = vadd.f32 %v1655, %v1671
        %v1676 = vstv %s278
        %v1677 = vmul.f32 %v1676, %v339
        %v1678 = vmul.f32 %v1676, %v340
        %v1679 = vmul.f32 %v1676, %v341
        %v1683 = vrot.slane %v1677, 5
        %v1684 = vrot.slane %v1678, 5
        %v1685 = vsel %vm1610, %v1683, %v1684
        %v1686 = vrot.slane %v1679, 5
        %v1687 = vsel %vm1610, %v1684, %v1686
        %1688 = vrot.lane.b32.xlu0 %v1685, 126
        %v1689 = vpop.permute.xlu0 %1688
        %1690 = vrot.lane.b32.xlu0 %v1687, 126
        %v1691 = vpop.permute.xlu0 %1690
        %v1694 = vadd.f32 %v1674, %v1689
        %v1695 = vadd.f32 %v1675, %v1691
        %v1696 = vstv %s327
        %v1697 = vmul.f32 %v1696, %v342
        %v1698 = vmul.f32 %v1696, %v343
        %v1699 = vmul.f32 %v1696, %v344
        %v1703 = vrot.slane %v1697, 5
        %v1704 = vrot.slane %v1698, 5
        %v1705 = vsel %vm1610, %v1703, %v1704
        %v1706 = vrot.slane %v1699, 5
        %v1707 = vsel %vm1610, %v1704, %v1706
        %1708 = vrot.lane.b32.xlu0 %v1705, 126
        %v1709 = vpop.permute.xlu0 %1708
        %1710 = vrot.lane.b32.xlu0 %v1707, 126
        %v1711 = vpop.permute.xlu0 %1710
        %v1714 = vadd.f32 %v1694, %v1709
        %v1715 = vadd.f32 %v1695, %v1711
        %v1716 = vstv %s279
        %v1717 = vmul.f32 %v1716, %v339
        %v1718 = vmul.f32 %v1716, %v340
        %v1719 = vmul.f32 %v1716, %v341
        %v1723 = vrot.slane %v1717, 5
        %v1724 = vrot.slane %v1718, 5
        %v1725 = vsel %vm1610, %v1723, %v1724
        %v1726 = vrot.slane %v1719, 5
        %v1727 = vsel %vm1610, %v1724, %v1726
        %1728 = vrot.lane.b32.xlu0 %v1725, 125
        %v1729 = vpop.permute.xlu0 %1728
        %1730 = vrot.lane.b32.xlu0 %v1727, 125
        %v1731 = vpop.permute.xlu0 %1730
        %v1734 = vadd.f32 %v1714, %v1729
        %v1735 = vadd.f32 %v1715, %v1731
        %v1736 = vstv %s328
        %v1737 = vmul.f32 %v1736, %v342
        %v1738 = vmul.f32 %v1736, %v343
        %v1739 = vmul.f32 %v1736, %v344
        %v1743 = vrot.slane %v1737, 5
        %v1744 = vrot.slane %v1738, 5
        %v1745 = vsel %vm1610, %v1743, %v1744
        %v1746 = vrot.slane %v1739, 5
        %v1747 = vsel %vm1610, %v1744, %v1746
        %1748 = vrot.lane.b32.xlu0 %v1745, 125
        %v1749 = vpop.permute.xlu0 %1748
        %1750 = vrot.lane.b32.xlu0 %v1747, 125
        %v1751 = vpop.permute.xlu0 %1750
        %v1754 = vadd.f32 %v1734, %v1749
        %v1755 = vadd.f32 %v1735, %v1751
        %v1756 = vstv %s280
        %v1757 = vmul.f32 %v1756, %v339
        %v1758 = vmul.f32 %v1756, %v340
        %v1759 = vmul.f32 %v1756, %v341
        %v1763 = vrot.slane %v1757, 5
        %v1764 = vrot.slane %v1758, 5
        %v1765 = vsel %vm1610, %v1763, %v1764
        %v1766 = vrot.slane %v1759, 5
        %v1767 = vsel %vm1610, %v1764, %v1766
        %1768 = vrot.lane.b32.xlu0 %v1765, 124
        %v1769 = vpop.permute.xlu0 %1768
        %1770 = vrot.lane.b32.xlu0 %v1767, 124
        %v1771 = vpop.permute.xlu0 %1770
        %v1774 = vadd.f32 %v1754, %v1769
        %v1775 = vadd.f32 %v1755, %v1771
        %v1776 = vstv %s329
        %v1777 = vmul.f32 %v1776, %v342
        %v1778 = vmul.f32 %v1776, %v343
        %v1779 = vmul.f32 %v1776, %v344
        %v1783 = vrot.slane %v1777, 5
        %v1784 = vrot.slane %v1778, 5
        %v1785 = vsel %vm1610, %v1783, %v1784
        %v1786 = vrot.slane %v1779, 5
        %v1787 = vsel %vm1610, %v1784, %v1786
        %1788 = vrot.lane.b32.xlu0 %v1785, 124
        %v1789 = vpop.permute.xlu0 %1788
        %1790 = vrot.lane.b32.xlu0 %v1787, 124
        %v1791 = vpop.permute.xlu0 %1790
        %v1794 = vadd.f32 %v1774, %v1789
        %v1795 = vadd.f32 %v1775, %v1791
        %v1796 = vstv %s281
        %v1797 = vmul.f32 %v1796, %v339
        %v1798 = vmul.f32 %v1796, %v340
        %v1799 = vmul.f32 %v1796, %v341
        %v1803 = vrot.slane %v1797, 5
        %v1804 = vrot.slane %v1798, 5
        %v1805 = vsel %vm1610, %v1803, %v1804
        %v1806 = vrot.slane %v1799, 5
        %v1807 = vsel %vm1610, %v1804, %v1806
        %1808 = vrot.lane.b32.xlu0 %v1805, 123
        %v1809 = vpop.permute.xlu0 %1808
        %1810 = vrot.lane.b32.xlu0 %v1807, 123
        %v1811 = vpop.permute.xlu0 %1810
        %v1814 = vadd.f32 %v1794, %v1809
        %v1815 = vadd.f32 %v1795, %v1811
        %v1816 = vstv %s330
        %v1817 = vmul.f32 %v1816, %v342
        %v1818 = vmul.f32 %v1816, %v343
        %v1819 = vmul.f32 %v1816, %v344
        %v1823 = vrot.slane %v1817, 5
        %v1824 = vrot.slane %v1818, 5
        %v1825 = vsel %vm1610, %v1823, %v1824
        %v1826 = vrot.slane %v1819, 5
        %v1827 = vsel %vm1610, %v1824, %v1826
        %1828 = vrot.lane.b32.xlu0 %v1825, 123
        %v1829 = vpop.permute.xlu0 %1828
        %1830 = vrot.lane.b32.xlu0 %v1827, 123
        %v1831 = vpop.permute.xlu0 %1830
        %v1834 = vadd.f32 %v1814, %v1829
        %v1835 = vadd.f32 %v1815, %v1831
        %v1836 = vstv %s282
        %v1837 = vmul.f32 %v1836, %v339
        %v1838 = vmul.f32 %v1836, %v340
        %v1839 = vmul.f32 %v1836, %v341
        %v1843 = vrot.slane %v1837, 5
        %v1844 = vrot.slane %v1838, 5
        %v1845 = vsel %vm1610, %v1843, %v1844
        %v1846 = vrot.slane %v1839, 5
        %v1847 = vsel %vm1610, %v1844, %v1846
        %1848 = vrot.lane.b32.xlu0 %v1845, 122
        %v1849 = vpop.permute.xlu0 %1848
        %1850 = vrot.lane.b32.xlu0 %v1847, 122
        %v1851 = vpop.permute.xlu0 %1850
        %v1854 = vadd.f32 %v1834, %v1849
        %v1855 = vadd.f32 %v1835, %v1851
        %v1856 = vstv %s331
        %v1857 = vmul.f32 %v1856, %v342
        %v1858 = vmul.f32 %v1856, %v343
        %v1859 = vmul.f32 %v1856, %v344
        %v1863 = vrot.slane %v1857, 5
        %v1864 = vrot.slane %v1858, 5
        %v1865 = vsel %vm1610, %v1863, %v1864
        %v1866 = vrot.slane %v1859, 5
        %v1867 = vsel %vm1610, %v1864, %v1866
        %1868 = vrot.lane.b32.xlu0 %v1865, 122
        %v1869 = vpop.permute.xlu0 %1868
        %1870 = vrot.lane.b32.xlu0 %v1867, 122
        %v1871 = vpop.permute.xlu0 %1870
        %v1874 = vadd.f32 %v1854, %v1869
        %v1875 = vadd.f32 %v1855, %v1871
        %v1876 = vstv %s283
        %v1877 = vmul.f32 %v1876, %v339
        %v1878 = vmul.f32 %v1876, %v340
        %v1879 = vmul.f32 %v1876, %v341
        %vm1883 = vcmask 1041408
        %v1884 = vrot.slane %v1877, 6
        %v1885 = vrot.slane %v1878, 6
        %v1886 = vsel %vm1883, %v1884, %v1885
        %v1887 = vrot.slane %v1879, 6
        %v1888 = vsel %vm1883, %v1885, %v1887
        %v1891 = vadd.f32 %v1874, %v1886
        %v1892 = vadd.f32 %v1875, %v1888
        %v1893 = vstv %s332
        %v1894 = vmul.f32 %v1893, %v342
        %v1895 = vmul.f32 %v1893, %v343
        %v1896 = vmul.f32 %v1893, %v344
        %v1900 = vrot.slane %v1894, 6
        %v1901 = vrot.slane %v1895, 6
        %v1902 = vsel %vm1883, %v1900, %v1901
        %v1903 = vrot.slane %v1896, 6
        %v1904 = vsel %vm1883, %v1901, %v1903
        %v1907 = vadd.f32 %v1891, %v1902
        %v1908 = vadd.f32 %v1892, %v1904
        %v1909 = vstv %s284
        %v1910 = vmul.f32 %v1909, %v339
        %v1911 = vmul.f32 %v1909, %v340
        %v1912 = vmul.f32 %v1909, %v341
        %v1916 = vrot.slane %v1910, 6
        %v1917 = vrot.slane %v1911, 6
        %v1918 = vsel %vm1883, %v1916, %v1917
        %v1919 = vrot.slane %v1912, 6
        %v1920 = vsel %vm1883, %v1917, %v1919
        %1921 = vrot.lane.b32.xlu0 %v1918, 127
        %v1922 = vpop.permute.xlu0 %1921
        %1923 = vrot.lane.b32.xlu0 %v1920, 127
        %v1924 = vpop.permute.xlu0 %1923
        %v1927 = vadd.f32 %v1907, %v1922
        %v1928 = vadd.f32 %v1908, %v1924
        %v1929 = vstv %s333
        %v1930 = vmul.f32 %v1929, %v342
        %v1931 = vmul.f32 %v1929, %v343
        %v1932 = vmul.f32 %v1929, %v344
        %v1936 = vrot.slane %v1930, 6
        %v1937 = vrot.slane %v1931, 6
        %v1938 = vsel %vm1883, %v1936, %v1937
        %v1939 = vrot.slane %v1932, 6
        %v1940 = vsel %vm1883, %v1937, %v1939
        %1941 = vrot.lane.b32.xlu0 %v1938, 127
        %v1942 = vpop.permute.xlu0 %1941
        %1943 = vrot.lane.b32.xlu0 %v1940, 127
        %v1944 = vpop.permute.xlu0 %1943
        %v1947 = vadd.f32 %v1927, %v1942
        %v1948 = vadd.f32 %v1928, %v1944
        %v1949 = vstv %s285
        %v1950 = vmul.f32 %v1949, %v339
        %v1951 = vmul.f32 %v1949, %v340
        %v1952 = vmul.f32 %v1949, %v341
        %v1956 = vrot.slane %v1950, 6
        %v1957 = vrot.slane %v1951, 6
        %v1958 = vsel %vm1883, %v1956, %v1957
        %v1959 = vrot.slane %v1952, 6
        %v1960 = vsel %vm1883, %v1957, %v1959
        %1961 = vrot.lane.b32.xlu0 %v1958, 126
        %v1962 = vpop.permute.xlu0 %1961
        %1963 = vrot.lane.b32.xlu0 %v1960, 126
        %v1964 = vpop.permute.xlu0 %1963
        %v1967 = vadd.f32 %v1947, %v1962
        %v1968 = vadd.f32 %v1948, %v1964
        %v1969 = vstv %s334
        %v1970 = vmul.f32 %v1969, %v342
        %v1971 = vmul.f32 %v1969, %v343
        %v1972 = vmul.f32 %v1969, %v344
        %v1976 = vrot.slane %v1970, 6
        %v1977 = vrot.slane %v1971, 6
        %v1978 = vsel %vm1883, %v1976, %v1977
        %v1979 = vrot.slane %v1972, 6
        %v1980 = vsel %vm1883, %v1977, %v1979
        %1981 = vrot.lane.b32.xlu0 %v1978, 126
        %v1982 = vpop.permute.xlu0 %1981
        %1983 = vrot.lane.b32.xlu0 %v1980, 126
        %v1984 = vpop.permute.xlu0 %1983
        %v1987 = vadd.f32 %v1967, %v1982
        %v1988 = vadd.f32 %v1968, %v1984
        %v1989 = vstv %s286
        %v1990 = vmul.f32 %v1989, %v339
        %v1991 = vmul.f32 %v1989, %v340
        %v1992 = vmul.f32 %v1989, %v341
        %v1996 = vrot.slane %v1990, 6
        %v1997 = vrot.slane %v1991, 6
        %v1998 = vsel %vm1883, %v1996, %v1997
        %v1999 = vrot.slane %v1992, 6
        %v2000 = vsel %vm1883, %v1997, %v1999
        %2001 = vrot.lane.b32.xlu0 %v1998, 125
        %v2002 = vpop.permute.xlu0 %2001
        %2003 = vrot.lane.b32.xlu0 %v2000, 125
        %v2004 = vpop.permute.xlu0 %2003
        %v2007 = vadd.f32 %v1987, %v2002
        %v2008 = vadd.f32 %v1988, %v2004
        %v2009 = vstv %s335
        %v2010 = vmul.f32 %v2009, %v342
        %v2011 = vmul.f32 %v2009, %v343
        %v2012 = vmul.f32 %v2009, %v344
        %v2016 = vrot.slane %v2010, 6
        %v2017 = vrot.slane %v2011, 6
        %v2018 = vsel %vm1883, %v2016, %v2017
        %v2019 = vrot.slane %v2012, 6
        %v2020 = vsel %vm1883, %v2017, %v2019
        %2021 = vrot.lane.b32.xlu0 %v2018, 125
        %v2022 = vpop.permute.xlu0 %2021
        %2023 = vrot.lane.b32.xlu0 %v2020, 125
        %v2024 = vpop.permute.xlu0 %2023
        %v2027 = vadd.f32 %v2007, %v2022
        %v2028 = vadd.f32 %v2008, %v2024
        %v2029 = vstv %s287
        %v2030 = vmul.f32 %v2029, %v339
        %v2031 = vmul.f32 %v2029, %v340
        %v2032 = vmul.f32 %v2029, %v341
        %v2036 = vrot.slane %v2030, 6
        %v2037 = vrot.slane %v2031, 6
        %v2038 = vsel %vm1883, %v2036, %v2037
        %v2039 = vrot.slane %v2032, 6
        %v2040 = vsel %vm1883, %v2037, %v2039
        %2041 = vrot.lane.b32.xlu0 %v2038, 124
        %v2042 = vpop.permute.xlu0 %2041
        %2043 = vrot.lane.b32.xlu0 %v2040, 124
        %v2044 = vpop.permute.xlu0 %2043
        %v2047 = vadd.f32 %v2027, %v2042
        %v2048 = vadd.f32 %v2028, %v2044
        %v2049 = vstv %s336
        %v2050 = vmul.f32 %v2049, %v342
        %v2051 = vmul.f32 %v2049, %v343
        %v2052 = vmul.f32 %v2049, %v344
        %v2056 = vrot.slane %v2050, 6
        %v2057 = vrot.slane %v2051, 6
        %v2058 = vsel %vm1883, %v2056, %v2057
        %v2059 = vrot.slane %v2052, 6
        %v2060 = vsel %vm1883, %v2057, %v2059
        %2061 = vrot.lane.b32.xlu0 %v2058, 124
        %v2062 = vpop.permute.xlu0 %2061
        %2063 = vrot.lane.b32.xlu0 %v2060, 124
        %v2064 = vpop.permute.xlu0 %2063
        %v2067 = vadd.f32 %v2047, %v2062
        %v2068 = vadd.f32 %v2048, %v2064
        %v2069 = vstv %s288
        %v2070 = vmul.f32 %v2069, %v339
        %v2071 = vmul.f32 %v2069, %v340
        %v2072 = vmul.f32 %v2069, %v341
        %v2076 = vrot.slane %v2070, 6
        %v2077 = vrot.slane %v2071, 6
        %v2078 = vsel %vm1883, %v2076, %v2077
        %v2079 = vrot.slane %v2072, 6
        %v2080 = vsel %vm1883, %v2077, %v2079
        %2081 = vrot.lane.b32.xlu0 %v2078, 123
        %v2082 = vpop.permute.xlu0 %2081
        %2083 = vrot.lane.b32.xlu0 %v2080, 123
        %v2084 = vpop.permute.xlu0 %2083
        %v2087 = vadd.f32 %v2067, %v2082
        %v2088 = vadd.f32 %v2068, %v2084
        %v2089 = vstv %s337
        %v2090 = vmul.f32 %v2089, %v342
        %v2091 = vmul.f32 %v2089, %v343
        %v2092 = vmul.f32 %v2089, %v344
        %v2096 = vrot.slane %v2090, 6
        %v2097 = vrot.slane %v2091, 6
        %v2098 = vsel %vm1883, %v2096, %v2097
        %v2099 = vrot.slane %v2092, 6
        %v2100 = vsel %vm1883, %v2097, %v2099
        %2101 = vrot.lane.b32.xlu0 %v2098, 123
        %v2102 = vpop.permute.xlu0 %2101
        %2103 = vrot.lane.b32.xlu0 %v2100, 123
        %v2104 = vpop.permute.xlu0 %2103
        %v2107 = vadd.f32 %v2087, %v2102
        %v2108 = vadd.f32 %v2088, %v2104
        %v2109 = vstv %s289
        %v2110 = vmul.f32 %v2109, %v339
        %v2111 = vmul.f32 %v2109, %v340
        %v2112 = vmul.f32 %v2109, %v341
        %v2116 = vrot.slane %v2110, 6
        %v2117 = vrot.slane %v2111, 6
        %v2118 = vsel %vm1883, %v2116, %v2117
        %v2119 = vrot.slane %v2112, 6
        %v2120 = vsel %vm1883, %v2117, %v2119
        %2121 = vrot.lane.b32.xlu0 %v2118, 122
        %v2122 = vpop.permute.xlu0 %2121
        %2123 = vrot.lane.b32.xlu0 %v2120, 122
        %v2124 = vpop.permute.xlu0 %2123
        %v2127 = vadd.f32 %v2107, %v2122
        %v2128 = vadd.f32 %v2108, %v2124
        %v2129 = vstv %s338
        %v2130 = vmul.f32 %v2129, %v342
        %v2131 = vmul.f32 %v2129, %v343
        %v2132 = vmul.f32 %v2129, %v344
        %v2136 = vrot.slane %v2130, 6
        %v2137 = vrot.slane %v2131, 6
        %v2138 = vsel %vm1883, %v2136, %v2137
        %v2139 = vrot.slane %v2132, 6
        %v2140 = vsel %vm1883, %v2137, %v2139
        %2141 = vrot.lane.b32.xlu0 %v2138, 122
        %v2142 = vpop.permute.xlu0 %2141
        %2143 = vrot.lane.b32.xlu0 %v2140, 122
        %v2144 = vpop.permute.xlu0 %2143
        %v2147 = vadd.f32 %v2127, %v2142
        %v2148 = vadd.f32 %v2128, %v2144
        %v2149 = vxor.u32 %v2147, 2147483648
        %v2150 = vxor.u32 %v2148, 2147483648
        %v2151 = vmul.f32 %v2149, 1.442695
        %v2152 = vpow.pop %v2151
        %v2153 = vmul.f32 %v2150, 1.442695
        %v2154 = vpow.pop %v2153
        %v2155 = vadd.f32 %v2152, 1.0
        %v2156 = vadd.f32 %v2154, 1.0
        %v2157 = vrcp.pop %v2155
        %v2158 = vmul.f32 %v2155, %v2157
        %v2159 = vsub.f32 1.0, %v2158
        %v2160 = vmul.f32 %v2157, %v2159
        %v2161 = vadd.f32 %v2157, %v2160
        %vm2162 = vweird.f32 %v2155
        %vm2163 = vweird.f32 %v2157
        %vm2164 = vmor %vm2162, %vm2163
        %v2165 = vsel %vm2164, %v2157, %v2161
        %v2166 = vand.u32 2147483647, %v2155
        %vm2167 = vcmp.eq.f32.partialorder %v2166, 8.507059e+37
        %v2168 = vand.u32 %v2155, 2147483648
        %v2169 = vor.u32 1.1754944e-38, %v2168
        %v2170 = vsel %vm2167, %v2169, %v2165
        %v2171 = vmul.f32 1.0, %v2170
        %v2172 = vrcp.pop %v2156
        %v2173 = vmul.f32 %v2156, %v2172
        %v2174 = vsub.f32 1.0, %v2173
        %v2175 = vmul.f32 %v2172, %v2174
        %v2176 = vadd.f32 %v2172, %v2175
        %vm2177 = vweird.f32 %v2156
        %vm2178 = vweird.f32 %v2172
        %vm2179 = vmor %vm2177, %vm2178
        %v2180 = vsel %vm2179, %v2172, %v2176
        %v2181 = vand.u32 2147483647, %v2156
        %vm2182 = vcmp.eq.f32.partialorder %v2181, 8.507059e+37
        %v2183 = vand.u32 %v2156, 2147483648
        %v2184 = vor.u32 1.1754944e-38, %v2183
        %v2185 = vsel %vm2182, %v2184, %v2180
        %v2186 = vmul.f32 1.0, %v2185
        %vm2187 = vcmask 130048
        %2188 = vst.msk [vmem:[#allocation4] sm:$0xff] %vm2187, %v2171
        %2189 = vst.msk [vmem:[#allocation4 + $0x8] sm:$0xff] %vm2187, %v2186
        %v2190 = vld [vmem:[#allocation4] sm:$0xff]
        %v2191 = vld [vmem:[#allocation4 + $0x8] sm:$0xff]
        %v2192 = vld [vmem:[%s155] sm:$0xff]
        %v2193 = vld [vmem:[%s155 + $0x8] sm:$0xff]
        %v2194 = vmul.f32 %v2192, %v2190
        %v2195 = vmul.f32 %v2193, %v2191
        %2196 = vst.msk [vmem:[%s177] sm:$0xff] %vm2187, %v2194
        %2197 = vst.msk [vmem:[%s177 + $0x8] sm:$0xff] %vm2187, %v2195
        %v2198 = vld [vmem:[%s182] sm:$0xff]
        %v2199 = vld [vmem:[%s182 + $0x8] sm:$0xff]
        %v2200 = vmul.f32 %v2198, %v2190
        %v2201 = vmul.f32 %v2199, %v2191
        %s2202 = scalar_lea.vmem %s177, 16 [#allocation10]
        %2203 = vst.msk [vmem:[%s2202] sm:$0xff] %vm2187, %v2200
        %2204 = vst.msk [vmem:[%s2202 + $0x8] sm:$0xff] %vm2187, %v2201
        %v2205 = vld [vmem:[%s189] sm:$0xff]
        %v2206 = vld [vmem:[%s189 + $0x8] sm:$0xff]
        %v2207 = vmul.f32 %v2205, %v2190
        %v2208 = vmul.f32 %v2206, %v2191
        %s2209 = scalar_lea.vmem %s177, 32 [#allocation10]
        %2210 = vst.msk [vmem:[%s2209] sm:$0xff] %vm2187, %v2207
        %2211 = vst.msk [vmem:[%s2209 + $0x8] sm:$0xff] %vm2187, %v2208
        %v2212 = vld [vmem:[%s196] sm:$0xff]
        %v2213 = vld [vmem:[%s196 + $0x8] sm:$0xff]
        %v2214 = vmul.f32 %v2212, %v2190
        %v2215 = vmul.f32 %v2213, %v2191
        %s2216 = scalar_lea.vmem %s177, 48 [#allocation10]
        %2217 = vst.msk [vmem:[%s2216] sm:$0xff] %vm2187, %v2214
        %2218 = vst.msk [vmem:[%s2216 + $0x8] sm:$0xff] %vm2187, %v2215
        %s2219 = sand.u32 %s75, 1
        %s2220 = scalar_lea.sflag [#allocation7], %s2219
        %s2221 = sand.u32 %s75, 1
        %s2222 = smul.addr %s2221, 64
        %s2223 = scalar_lea.vmem [#allocation10], %s2222
        // Predicated region
        $region37: #{tpu_custom_call.1} parent=27 // pred_check
          %p2224 = pneg %p85
        $region38: #{tpu_custom_call.1} parent=27 // pred_check_branch
          %2226 = sbr.rel (%p2224) target = $region40
        $region39: #{tpu_custom_call.1} parent=27 // pred_region
          %2228 = vsyncadd %s2220, 0
          %s2229 = smul.addr %s20, 8
          %s2230 = smul.addr %s2229, 8
          %s2231 = scalar_lea.hbm %s2, %s2230
          %s2232 = sshll.u32 %s2223, 4
          %s2233 = int_to_ptr.vmem [resolvable:$true] %s2232
          %s2234 = sshll.u32 %s2231, 4
          %s2235 = int_to_ptr.hbm [resolvable:$true] %s2234
          %2240 = dma.vmem_to_hbm [thread:$0]  %s2233, 1024, %s2235, %s2220, 128, 128, 8
        $region40: #{tpu_custom_call.1} parent=27 // pred_fallthru
          _
      $region28: #{tpu_custom_call.1} parent=5 // pred_fallthru
        _
      %p2241 = scmp.le.s32.totalorder 2, %s15
      // Predicated region
      $region41: #{tpu_custom_call.1} parent=5 // pred_check
        %p2242 = pneg %p2241
      $region42: #{tpu_custom_call.1} parent=5 // pred_check_branch
        %2244 = sbr.rel (%p2242) target = $region44
      $region43: #{tpu_custom_call.1} parent=5 // pred_region
        %s2245 = ssub.s32 %s15, 2
        // Predicated region
        $region45: #{tpu_custom_call.1} parent=43 // pred_check
          %p2246 = pneg %p91
        $region46: #{tpu_custom_call.1} parent=43 // pred_check_branch
          %2248 = sbr.rel (%p2246) target = $region48
        $region47: #{tpu_custom_call.1} parent=43 // pred_region
          %s2249 = sand.u32 %s76, 1
          %s2250 = scalar_lea.sflag [#allocation7], %s2249
          %s2251 = sand.u32 %s76, 1
          %s2252 = smul.addr %s2251, 64
          %s2253 = scalar_lea.vmem [#allocation10], %s2252
          %2255 = dma.done %s2250, 1024
        $region48: #{tpu_custom_call.1} parent=43 // pred_fallthru
          _
      $region44: #{tpu_custom_call.1} parent=5 // pred_fallthru
        _
    $region6: #{tpu_custom_call.1} parent=1 // loop_footer
      %s19 = sadd.s32 1, %s15
    $region7: #{tpu_custom_call.1} parent=1 // loop_footer_branch
      %14 = sbr.rel target = $region3
    $region8: #{tpu_custom_call.1} parent=1 // loop_exit
      _
    %2256 = vsyncpa [#allocation6], 1
    %s2257 = scalar_lea.sflag [#allocation6], 1
    %2258 = vsyncpa %s2257, 1
    %2259 = vsyncpa [#allocation7], 1
    %s2260 = scalar_lea.sflag [#allocation7], 1
    %2261 = vsyncpa %s2260, 1
    %2262 = vsyncpa [#allocation8], 1
    %s2263 = scalar_lea.sflag [#allocation8], 1
    %2264 = vsyncpa %s2263, 1

</llo_original>
